<compile_context>
chip_gen: v7x
topology: tpu7x:2x2x1
jax: 0.10.0
libtpu: 0.0.40
codegen_flags: <defaults>
</compile_context>

<pallas_src>
import jax
import jax.numpy as jnp
from jax.experimental import pallas as pl
from jax.experimental.pallas import tpu as pltpu


def _vae_kernel(
    x_ref, eps_ref,
    w_e1_ref, b_e1_ref,
    w_muvar_ref, b_muvar_ref,
    w_d1_ref, b_d1_ref,
    w_d2_ref, b_d2_ref,
    pred_ref, muvar_ref,
):
    Z = eps_ref.shape[-1]
    bf16 = jnp.bfloat16

    # ----- encoder hidden layer (bf16 MXU, f32 accumulation) -----
    x = x_ref[...].astype(bf16)
    h = jnp.dot(x, w_e1_ref[...], preferred_element_type=jnp.float32) + b_e1_ref[...]
    h = jnp.maximum(h, 0.0)  # ReLU, f32 on VPU

    # ----- fused mu/var head: one matmul of width 2Z -----
    muvar = (
        jnp.dot(h.astype(bf16), w_muvar_ref[...], preferred_element_type=jnp.float32)
        + b_muvar_ref[...]
    )
    z_mu = muvar[:, :Z]
    z_var = muvar[:, Z:]

    # ----- reparameterization (f32): std = exp(z_var / 2); z = eps * std + mu -----
    std = jnp.exp(z_var * 0.5)
    z = eps_ref[...] * std + z_mu

    # ----- decoder -----
    hd = (
        jnp.dot(z.astype(bf16), w_d1_ref[...], preferred_element_type=jnp.float32)
        + b_d1_ref[...]
    )
    hd = jnp.maximum(hd, 0.0)
    logits = (
        jnp.dot(hd.astype(bf16), w_d2_ref[...], preferred_element_type=jnp.float32)
        + b_d2_ref[...]
    )

    pred_ref[...] = jax.nn.sigmoid(logits).astype(pred_ref.dtype)
    muvar_ref[...] = muvar.astype(muvar_ref.dtype)


def vae_forward(x, eps, params, *, tile_b=128):
    """Fused VAE forward. x: (B, D) f32, eps: (B, Z) f32 -> (pred, z_mu, z_var)."""
    B, D = x.shape
    Z = eps.shape[1]
    H = params["w_e1"].shape[1]
    Dout = params["w_d2"].shape[1]

    # Pack fused mu/var head; cast matmul weights to bf16, keep biases f32.
    w_e1 = params["w_e1"].astype(jnp.bfloat16)
    b_e1 = params["b_e1"].astype(jnp.float32)
    w_muvar = jnp.concatenate([params["w_mu"], params["w_var"]], axis=1).astype(jnp.bfloat16)
    b_muvar = jnp.concatenate([params["b_mu"], params["b_var"]], axis=1).astype(jnp.float32)
    w_d1 = params["w_d1"].astype(jnp.bfloat16)
    b_d1 = params["b_d1"].astype(jnp.float32)
    w_d2 = params["w_d2"].astype(jnp.bfloat16)
    b_d2 = params["b_d2"].astype(jnp.float32)

    # Batch tiling (pad B up to a multiple of tile_b if needed).
    tile_b = min(tile_b, B)
    num_tiles = pl.cdiv(B, tile_b)
    Bp = num_tiles * tile_b
    if Bp != B:
        x = jnp.pad(x, ((0, Bp - B), (0, 0)))
        eps = jnp.pad(eps, ((0, Bp - B), (0, 0)))

    # Batch-tiled arrays march along the grid; weights/biases stay resident.
    def row_spec(d):
        return pl.BlockSpec((tile_b, d), lambda i: (i, 0))

    def resident_spec(a):
        return pl.BlockSpec(a.shape, lambda i: (0, 0))

    in_arrays = (x, eps, w_e1, b_e1, w_muvar, b_muvar, w_d1, b_d1, w_d2, b_d2)
    in_specs = [row_spec(D), row_spec(Z)] + [resident_spec(a) for a in in_arrays[2:]]

    out_shape = (
        jax.ShapeDtypeStruct((Bp, Dout), jnp.float32),   # predicted
        jax.ShapeDtypeStruct((Bp, 2 * Z), jnp.float32),  # mu || var (lane-dense slab)
    )
    out_specs = (row_spec(Dout), row_spec(2 * Z))

    # Actual VMEM footprint: double-buffered batch tiles + resident weights + slack.
    act_bytes = 2 * 4 * tile_b * (D + Z + Dout + 2 * Z)
    wt_bytes = 2 * (D * H + H * 2 * Z + Z * H + H * Dout) + 4 * (H + 2 * Z + H + Dout)
    vmem_limit = int(act_bytes + wt_bytes + (8 << 20))  # headroom for intermediates

    flops = 2 * Bp * (D * H + H * 2 * Z + Z * H + H * Dout)
    cost = pl.CostEstimate(
        flops=flops,
        transcendentals=Bp * (Z + Dout),
        bytes_accessed=int(
            4 * (x.size + eps.size) + wt_bytes + 4 * Bp * (Dout + 2 * Z)
        ),
    )

    pred, muvar = pl.pallas_call(
        _vae_kernel,
        out_shape=out_shape,
        grid_spec=pltpu.PrefetchScalarGridSpec(
            num_scalar_prefetch=0,
            grid=(num_tiles,),
            in_specs=in_specs,
            out_specs=out_specs,
        ),
        compiler_params=pltpu.CompilerParams(
            dimension_semantics=("parallel",),
            vmem_limit_bytes=vmem_limit,
        ),
        cost_estimate=cost,
    )(*in_arrays)

    pred = pred[:B]
    z_mu = muvar[:B, :Z]
    z_var = muvar[:B, Z:]
    return pred, z_mu, z_var


def init_params(key, in_dim, hidden_dim, z_dim):
    """Deterministic synthetic params (weights (in, out), biases (1, out))."""
    ks = jax.random.split(key, 10)
    s = lambda fan_in: 1.0 / jnp.sqrt(jnp.float32(fan_in))
    return {
        "w_e1": jax.random.normal(ks[0], (in_dim, hidden_dim), jnp.float32) * s(in_dim),
        "b_e1": jax.random.normal(ks[1], (1, hidden_dim), jnp.float32) * 0.01,
        "w_mu": jax.random.normal(ks[2], (hidden_dim, z_dim), jnp.float32) * s(hidden_dim),
        "b_mu": jax.random.normal(ks[3], (1, z_dim), jnp.float32) * 0.01,
        "w_var": jax.random.normal(ks[4], (hidden_dim, z_dim), jnp.float32) * s(hidden_dim),
        "b_var": jax.random.normal(ks[5], (1, z_dim), jnp.float32) * 0.01,
        "w_d1": jax.random.normal(ks[6], (z_dim, hidden_dim), jnp.float32) * s(z_dim),
        "b_d1": jax.random.normal(ks[7], (1, hidden_dim), jnp.float32) * 0.01,
        "w_d2": jax.random.normal(ks[8], (hidden_dim, in_dim), jnp.float32) * s(hidden_dim),
        "b_d2": jax.random.normal(ks[9], (1, in_dim), jnp.float32) * 0.01,
    }


def vae_reference_f32(x, eps, p):
    """Pure-f32 JAX reference matching the PyTorch forward."""
    h = jnp.maximum(x @ p["w_e1"] + p["b_e1"], 0.0)
    z_mu = h @ p["w_mu"] + p["b_mu"]
    z_var = h @ p["w_var"] + p["b_var"]
    std = jnp.exp(z_var / 2.0)
    z = eps * std + z_mu
    hd = jnp.maximum(z @ p["w_d1"] + p["b_d1"], 0.0)
    pred = jax.nn.sigmoid(hd @ p["w_d2"] + p["b_d2"])
    return pred, z_mu, z_var


def vae_reference_bf16(x, eps, p):
    """Reference with the same bf16-operand / f32-accumulate matmuls as the kernel."""
    bf = jnp.bfloat16
    dot = lambda a, b: jnp.dot(a.astype(bf), b.astype(bf), preferred_element_type=jnp.float32)
    h = jnp.maximum(dot(x, p["w_e1"]) + p["b_e1"], 0.0)
    z_mu = dot(h, p["w_mu"]) + p["b_mu"]
    z_var = dot(h, p["w_var"]) + p["b_var"]
    std = jnp.exp(z_var / 2.0)
    z = eps * std + z_mu
    hd = jnp.maximum(dot(z, p["w_d1"]) + p["b_d1"], 0.0)
    pred = jax.nn.sigmoid(dot(hd, p["w_d2"]) + p["b_d2"])
    return pred, z_mu, z_var


if __name__ == "__main__":
    # Small MLP-VAE shapes: B spans two batch tiles (grid of 2) at TILE_B=128.
    B, D, H, Z = 256, 256, 128, 32

    key = jax.random.PRNGKey(0)
    k_x, k_eps, k_p = jax.random.split(key, 3)

    x = jax.nn.sigmoid(jax.random.normal(k_x, (B, D), jnp.float32))  # pixel-like inputs
    eps = jax.random.normal(k_eps, (B, Z), jnp.float32)              # randn_like(std) analogue
    params = init_params(k_p, D, H, Z)

    predicted, z_mu, z_var = jax.block_until_ready(vae_forward(x, eps, params))

    # Tight check against a reference using identical bf16 matmul casting.
    rb_pred, rb_mu, rb_var = vae_reference_bf16(x, eps, params)
    assert jnp.allclose(predicted, rb_pred, atol=5e-3, rtol=5e-3)
    assert jnp.allclose(z_mu, rb_mu, atol=5e-3, rtol=5e-3)
    assert jnp.allclose(z_var, rb_var, atol=5e-3, rtol=5e-3)

    # Loose check against the full-f32 reference (bf16 rounding tolerance).
    rf_pred, rf_mu, rf_var = vae_reference_f32(x, eps, params)
    assert jnp.allclose(predicted, rf_pred, atol=5e-2, rtol=5e-2)
    assert jnp.allclose(z_mu, rf_mu, atol=5e-2, rtol=5e-2)
    assert jnp.allclose(z_var, rf_var, atol=5e-2, rtol=5e-2)

    print("KERNEL_OK")
</pallas_src>

<mosaic_0001>
module attributes {stable_mosaic.version = 11 : i64} {
  func.func @_vae_kernel(%arg0: i32, %arg1: memref<128x256xf32, #tpu.memory_space<vmem>>, %arg2: memref<128x32xf32, #tpu.memory_space<vmem>>, %arg3: memref<256x128xbf16, #tpu.memory_space<vmem>>, %arg4: memref<1x128xf32, #tpu.memory_space<vmem>>, %arg5: memref<128x64xbf16, #tpu.memory_space<vmem>>, %arg6: memref<1x64xf32, #tpu.memory_space<vmem>>, %arg7: memref<32x128xbf16, #tpu.memory_space<vmem>>, %arg8: memref<1x128xf32, #tpu.memory_space<vmem>>, %arg9: memref<128x256xbf16, #tpu.memory_space<vmem>>, %arg10: memref<1x256xf32, #tpu.memory_space<vmem>>, %arg11: memref<128x256xf32, #tpu.memory_space<vmem>>, %arg12: memref<128x64xf32, #tpu.memory_space<vmem>>) attributes {dimension_semantics = [#tpu.dimension_semantics<parallel>], iteration_bounds = array<i64: 2>, scalar_prefetch = 0 : i64, scratch_operands = 0 : i64, tpu.core_type = #tpu.core_type<tc>, window_params = [{transform_indices = @transform_0, window_bounds = array<i64: 128, 256>}, {transform_indices = @transform_1, window_bounds = array<i64: 128, 32>}, {pipeline_mode = #tpu.pipeline_mode<synchronous>, transform_indices = @transform_2, window_bounds = array<i64: 256, 128>}, {pipeline_mode = #tpu.pipeline_mode<synchronous>, transform_indices = @transform_3, window_bounds = array<i64: 1, 128>}, {pipeline_mode = #tpu.pipeline_mode<synchronous>, transform_indices = @transform_4, window_bounds = array<i64: 128, 64>}, {pipeline_mode = #tpu.pipeline_mode<synchronous>, transform_indices = @transform_5, window_bounds = array<i64: 1, 64>}, {pipeline_mode = #tpu.pipeline_mode<synchronous>, transform_indices = @transform_6, window_bounds = array<i64: 32, 128>}, {pipeline_mode = #tpu.pipeline_mode<synchronous>, transform_indices = @transform_7, window_bounds = array<i64: 1, 128>}, {pipeline_mode = #tpu.pipeline_mode<synchronous>, transform_indices = @transform_8, window_bounds = array<i64: 128, 256>}, {pipeline_mode = #tpu.pipeline_mode<synchronous>, transform_indices = @transform_9, window_bounds = array<i64: 1, 256>}, {transform_indices = @transform_10, window_bounds = array<i64: 128, 256>}, {transform_indices = @transform_11, window_bounds = array<i64: 128, 64>}]} {
    %c0 = arith.constant 0 : index
    %c0_0 = arith.constant 0 : index
    %0 = vector.load %arg1[%c0, %c0_0] : memref<128x256xf32, #tpu.memory_space<vmem>>, vector<128x256xf32>
    %1 = arith.truncf %0 : vector<128x256xf32> to vector<128x256xbf16>
    %c0_1 = arith.constant 0 : index
    %c0_2 = arith.constant 0 : index
    %2 = vector.load %arg3[%c0_1, %c0_2] : memref<256x128xbf16, #tpu.memory_space<vmem>>, vector<256x128xbf16>
    %cst = arith.constant dense<0.000000e+00> : vector<128x128xf32>
    %3 = tpu.matmul %1, %2, %cst {dimension_numbers = #tpu.dot_dimension_numbers<[1], [0], [0], [1], [0, 0, 1, 1], [], []>} : vector<128x256xbf16>, vector<256x128xbf16>, vector<128x128xf32> -> vector<128x128xf32>
    %c0_3 = arith.constant 0 : index
    %c0_4 = arith.constant 0 : index
    %4 = vector.load %arg4[%c0_3, %c0_4] : memref<1x128xf32, #tpu.memory_space<vmem>>, vector<1x128xf32>
    %5 = vector.broadcast %4 : vector<1x128xf32> to vector<128x128xf32>
    %6 = arith.addf %3, %5 : vector<128x128xf32>
    %cst_5 = arith.constant 0.000000e+00 : f32
    %7 = vector.broadcast %cst_5 : f32 to vector<128x128xf32>
    %8 = arith.maximumf %6, %7 : vector<128x128xf32>
    %9 = arith.truncf %8 : vector<128x128xf32> to vector<128x128xbf16>
    %c0_6 = arith.constant 0 : index
    %c0_7 = arith.constant 0 : index
    %10 = vector.load %arg5[%c0_6, %c0_7] : memref<128x64xbf16, #tpu.memory_space<vmem>>, vector<128x64xbf16>
    %cst_8 = arith.constant dense<0.000000e+00> : vector<128x64xf32>
    %11 = tpu.matmul %9, %10, %cst_8 {dimension_numbers = #tpu.dot_dimension_numbers<[1], [0], [0], [1], [0, 0, 1, 1], [], []>} : vector<128x128xbf16>, vector<128x64xbf16>, vector<128x64xf32> -> vector<128x64xf32>
    %c0_9 = arith.constant 0 : index
    %c0_10 = arith.constant 0 : index
    %12 = vector.load %arg6[%c0_9, %c0_10] : memref<1x64xf32, #tpu.memory_space<vmem>>, vector<1x64xf32>
    %13 = vector.broadcast %12 : vector<1x64xf32> to vector<128x64xf32>
    %14 = arith.addf %11, %13 : vector<128x64xf32>
    %15 = vector.extract_strided_slice %14 {offsets = [0, 0], sizes = [128, 32], strides = [1, 1]} : vector<128x64xf32> to vector<128x32xf32>
    %16 = vector.extract_strided_slice %14 {offsets = [0, 32], sizes = [128, 32], strides = [1, 1]} : vector<128x64xf32> to vector<128x32xf32>
    %cst_11 = arith.constant 5.000000e-01 : f32
    %17 = vector.broadcast %cst_11 : f32 to vector<128x32xf32>
    %18 = arith.mulf %16, %17 : vector<128x32xf32>
    %19 = math.exp %18 : vector<128x32xf32>
    %c0_12 = arith.constant 0 : index
    %c0_13 = arith.constant 0 : index
    %20 = vector.load %arg2[%c0_12, %c0_13] : memref<128x32xf32, #tpu.memory_space<vmem>>, vector<128x32xf32>
    %21 = arith.mulf %20, %19 : vector<128x32xf32>
    %22 = arith.addf %21, %15 : vector<128x32xf32>
    %23 = arith.truncf %22 : vector<128x32xf32> to vector<128x32xbf16>
    %c0_14 = arith.constant 0 : index
    %c0_15 = arith.constant 0 : index
    %24 = vector.load %arg7[%c0_14, %c0_15] : memref<32x128xbf16, #tpu.memory_space<vmem>>, vector<32x128xbf16>
    %cst_16 = arith.constant dense<0.000000e+00> : vector<128x128xf32>
    %25 = tpu.matmul %23, %24, %cst_16 {dimension_numbers = #tpu.dot_dimension_numbers<[1], [0], [0], [1], [0, 0, 1, 1], [], []>} : vector<128x32xbf16>, vector<32x128xbf16>, vector<128x128xf32> -> vector<128x128xf32>
    %c0_17 = arith.constant 0 : index
    %c0_18 = arith.constant 0 : index
    %26 = vector.load %arg8[%c0_17, %c0_18] : memref<1x128xf32, #tpu.memory_space<vmem>>, vector<1x128xf32>
    %27 = vector.broadcast %26 : vector<1x128xf32> to vector<128x128xf32>
    %28 = arith.addf %25, %27 : vector<128x128xf32>
    %cst_19 = arith.constant 0.000000e+00 : f32
    %29 = vector.broadcast %cst_19 : f32 to vector<128x128xf32>
    %30 = arith.maximumf %28, %29 : vector<128x128xf32>
    %31 = arith.truncf %30 : vector<128x128xf32> to vector<128x128xbf16>
    %c0_20 = arith.constant 0 : index
    %c0_21 = arith.constant 0 : index
    %32 = vector.load %arg9[%c0_20, %c0_21] : memref<128x256xbf16, #tpu.memory_space<vmem>>, vector<128x256xbf16>
    %cst_22 = arith.constant dense<0.000000e+00> : vector<128x256xf32>
    %33 = tpu.matmul %31, %32, %cst_22 {dimension_numbers = #tpu.dot_dimension_numbers<[1], [0], [0], [1], [0, 0, 1, 1], [], []>} : vector<128x128xbf16>, vector<128x256xbf16>, vector<128x256xf32> -> vector<128x256xf32>
    %c0_23 = arith.constant 0 : index
    %c0_24 = arith.constant 0 : index
    %34 = vector.load %arg10[%c0_23, %c0_24] : memref<1x256xf32, #tpu.memory_space<vmem>>, vector<1x256xf32>
    %35 = vector.broadcast %34 : vector<1x256xf32> to vector<128x256xf32>
    %36 = arith.addf %33, %35 : vector<128x256xf32>
    %37 = arith.negf %36 : vector<128x256xf32>
    %38 = math.exp %37 : vector<128x256xf32>
    %cst_25 = arith.constant 1.000000e+00 : f32
    %39 = vector.broadcast %cst_25 : f32 to vector<128x256xf32>
    %40 = arith.addf %39, %38 : vector<128x256xf32>
    %41 = arith.divf %39, %40 : vector<128x256xf32>
    %c0_26 = arith.constant 0 : index
    %c0_27 = arith.constant 0 : index
    %42 = vector.load %arg11[%c0_26, %c0_27] : memref<128x256xf32, #tpu.memory_space<vmem>>, vector<128x256xf32>
    tpu.vector_store %arg11[%c0_26, %c0_27], %41 {strides = array<i32>} : memref<128x256xf32, #tpu.memory_space<vmem>>, vector<128x256xf32>,
    %c0_28 = arith.constant 0 : index
    %c0_29 = arith.constant 0 : index
    %43 = vector.load %arg12[%c0_28, %c0_29] : memref<128x64xf32, #tpu.memory_space<vmem>>, vector<128x64xf32>
    tpu.vector_store %arg12[%c0_28, %c0_29], %14 {strides = array<i32>} : memref<128x64xf32, #tpu.memory_space<vmem>>, vector<128x64xf32>,
    return
  }
  func.func @transform_0(%arg0: i32) -> (i32, i32) {
    %c0_i32 = arith.constant 0 : i32
    %c0_i32_0 = arith.constant 0 : i32
    return %arg0, %c0_i32 : i32, i32
  }
  func.func @transform_1(%arg0: i32) -> (i32, i32) {
    %c0_i32 = arith.constant 0 : i32
    %c0_i32_0 = arith.constant 0 : i32
    return %arg0, %c0_i32 : i32, i32
  }
  func.func @transform_2(%arg0: i32) -> (i32, i32) {
    %c0_i32 = arith.constant 0 : i32
    %c0_i32_0 = arith.constant 0 : i32
    %c0_i32_1 = arith.constant 0 : i32
    return %c0_i32, %c0_i32_0 : i32, i32
  }
  func.func @transform_3(%arg0: i32) -> (i32, i32) {
    %c0_i32 = arith.constant 0 : i32
    %c0_i32_0 = arith.constant 0 : i32
    %c0_i32_1 = arith.constant 0 : i32
    return %c0_i32, %c0_i32_0 : i32, i32
  }
  func.func @transform_4(%arg0: i32) -> (i32, i32) {
    %c0_i32 = arith.constant 0 : i32
    %c0_i32_0 = arith.constant 0 : i32
    %c0_i32_1 = arith.constant 0 : i32
    return %c0_i32, %c0_i32_0 : i32, i32
  }
  func.func @transform_5(%arg0: i32) -> (i32, i32) {
    %c0_i32 = arith.constant 0 : i32
    %c0_i32_0 = arith.constant 0 : i32
    %c0_i32_1 = arith.constant 0 : i32
    return %c0_i32, %c0_i32_0 : i32, i32
  }
  func.func @transform_6(%arg0: i32) -> (i32, i32) {
    %c0_i32 = arith.constant 0 : i32
    %c0_i32_0 = arith.constant 0 : i32
    %c0_i32_1 = arith.constant 0 : i32
    return %c0_i32, %c0_i32_0 : i32, i32
  }
  func.func @transform_7(%arg0: i32) -> (i32, i32) {
    %c0_i32 = arith.constant 0 : i32
    %c0_i32_0 = arith.constant 0 : i32
    %c0_i32_1 = arith.constant 0 : i32
    return %c0_i32, %c0_i32_0 : i32, i32
  }
  func.func @transform_8(%arg0: i32) -> (i32, i32) {
    %c0_i32 = arith.constant 0 : i32
    %c0_i32_0 = arith.constant 0 : i32
    %c0_i32_1 = arith.constant 0 : i32
    return %c0_i32, %c0_i32_0 : i32, i32
  }
  func.func @transform_9(%arg0: i32) -> (i32, i32) {
    %c0_i32 = arith.constant 0 : i32
    %c0_i32_0 = arith.constant 0 : i32
    %c0_i32_1 = arith.constant 0 : i32
    return %c0_i32, %c0_i32_0 : i32, i32
  }
  func.func @transform_10(%arg0: i32) -> (i32, i32) {
    %c0_i32 = arith.constant 0 : i32
    %c0_i32_0 = arith.constant 0 : i32
    return %arg0, %c0_i32 : i32, i32
  }
  func.func @transform_11(%arg0: i32) -> (i32, i32) {
    %c0_i32 = arith.constant 0 : i32
    %c0_i32_0 = arith.constant 0 : i32
    return %arg0, %c0_i32 : i32, i32
  }
}

</mosaic_0001>

<llo_original>
// kernel: tpu_custom_call.1
$region0: #{tpu_custom_call.1}
  #allocation0 [shape = 'u32[]', space=smem, size = 0x4, offset = 0x4, fixed_abs, tag = 'smem constant byte address 0x4 - core index']
  #allocation1 [shape = 'u32[144,128]{1,0:T(1,128)}', space=vmem, size = 0x12000, scoped, tag = 'internal scratch']
  %s0 = inlined_call_operand.hbm [shape: f32[256,256], index: 0, kind: input, shape index: {}]
  %s1 = inlined_call_operand.vmem [shape: f32[256,32], index: 1, kind: input, shape index: {}]
  %s2 = inlined_call_operand.vmem [shape: bf16[256,128], index: 2, kind: input, shape index: {}]
  %s3 = inlined_call_operand.vmem [shape: f32[1,128], index: 3, kind: input, shape index: {}]
  %s4 = inlined_call_operand.vmem [shape: bf16[128,64], index: 4, kind: input, shape index: {}]
  %s5 = inlined_call_operand.vmem [shape: f32[1,64], index: 5, kind: input, shape index: {}]
  %s6 = inlined_call_operand.vmem [shape: bf16[32,128], index: 6, kind: input, shape index: {}]
  %s7 = inlined_call_operand.vmem [shape: f32[1,128], index: 7, kind: input, shape index: {}]
  %s8 = inlined_call_operand.vmem [shape: bf16[128,256], index: 8, kind: input, shape index: {}]
  %s9 = inlined_call_operand.vmem [shape: f32[1,256], index: 9, kind: input, shape index: {}]
  %s10 = inlined_call_operand.hbm [shape: f32[256,256], index: 10, kind: output, shape index: {0}]
  %s11 = inlined_call_operand.vmem [shape: f32[256,64], index: 11, kind: output, shape index: {1}]
  %12 = xla_tuple %s10, %s11
  %s13 = sld [smem:[#allocation0]]
  $region85: #{tpu_custom_call.1} parent=0
    _
  %s15 = ssub.s32 1, %s13
  %s16 = scalar_select 0, %s15, %s13
  $region1: #{tpu_custom_call.1} parent=0
    #allocation2 [shape = 'u8[262144]{0}', space=vmem, size = 0x40000, scoped, tag = 'input window, operand 0']
    #allocation3 [shape = 's32[2]{0}', space=sflag, size = 0x8, scoped, tag = 'scoped memory for tpu_custom_call.1']
    #allocation4 [shape = 's32[2]{0}', space=sflag, size = 0x8, scoped, tag = 'scoped memory for tpu_custom_call.1']
    #allocation5 [shape = 'u8[262144]{0}', space=vmem, size = 0x40000, scoped, tag = 'output window, operand 0']
    %17 = vsyncpa [#allocation3], 0
    %s18 = scalar_lea.sflag [#allocation3], 1
    %19 = vsyncpa %s18, 0
    %20 = vsyncpa [#allocation4], 0
    %s21 = scalar_lea.sflag [#allocation4], 1
    %22 = vsyncpa %s21, 0
    loop: start=0, step=1, limit=4
    $region2: #{tpu_custom_call.1} parent=1 // loop_pre_header
      _
    $region3: #{tpu_custom_call.1} parent=1 // loop_header
      %s24 = sphi 0, %s28
      %p25 = scmp.ge.s32.totalorder %s24, 4
      %s34 = sphi 0, %s36
      %s37 = sphi 0, %s34
      %s38 = sphi 0, %s37
      %s54 = sphi 0, %s38
      %s60 = sphi 0, %s62
      %s63 = sphi 0, %s60
      %s64 = sphi 0, %s63
      %s80 = sphi 0, %s64
      %s84 = sphi 0, %s84
      %s86 = sphi 0, %s84
      %s87 = sphi 0, %s86
      %s101 = sphi 0, %s87
      %s105 = sphi 0, %s105
      %s107 = sphi 0, %s105
      %s108 = sphi 0, %s107
      %s122 = sphi 0, %s108
      %s126 = sphi 0, %s126
      %s128 = sphi 0, %s126
      %s129 = sphi 0, %s128
      %s143 = sphi 0, %s129
      %s147 = sphi 0, %s147
      %s149 = sphi 0, %s147
      %s150 = sphi 0, %s149
      %s164 = sphi 0, %s150
      %s168 = sphi 0, %s168
      %s170 = sphi 0, %s168
      %s171 = sphi 0, %s170
      %s185 = sphi 0, %s171
      %s189 = sphi 0, %s189
      %s191 = sphi 0, %s189
      %s192 = sphi 0, %s191
      %s206 = sphi 0, %s192
      %s210 = sphi 0, %s210
      %s212 = sphi 0, %s210
      %s213 = sphi 0, %s212
      %s227 = sphi 0, %s213
      %s231 = sphi 0, %s231
      %s233 = sphi 0, %s231
      %s234 = sphi 0, %s233
      %s248 = sphi 0, %s234
      %s254 = sphi 0, %s256
      %s257 = sphi 0, %s254
      %s258 = sphi 0, %s257
      %s274 = sphi 0, %s258
      %s280 = sphi 0, %s282
      %s283 = sphi 0, %s280
      %s284 = sphi 0, %s283
      %s300 = sphi 0, %s284
    $region4: #{tpu_custom_call.1} parent=1 // loop_header_branch
      %27 = sbr.rel (%p25) target = $region8
    $region5: #{tpu_custom_call.1} parent=1 // loop_body
      %s29 = ssub.s32 %s24, 1
      %s30 = ssub.s32 %s24, 2
      %s31 = sadd.s32 %s24, 1
      %s32 = ssub.s32 %s24, %s31
      %p33 = scmp.eq.s32.totalorder %s32, 0
      %s35 = sadd.s32 %s34, 1
      %s36 = scalar_select %p33, %s34, %s35
      %p39 = pneg %p33
      %p40 = scmp.eq.s32.totalorder %s24, 1
      %p41 = por %p39, %p40
      %p42 = scmp.ne.s32.totalorder %s34, %s37
      %p43 = scmp.eq.s32.totalorder %s24, 0
      %p44 = por %p42, %p43
      %p45 = scmp.ne.s32.totalorder %s34, %s37
      %p46 = scmp.eq.s32.totalorder %s29, 1
      %p47 = por %p45, %p46
      %p48 = scmp.ne.s32.totalorder %s37, %s38
      %p49 = scmp.eq.s32.totalorder %s29, 0
      %p50 = por %p48, %p49
      %p51 = scmp.ne.s32.totalorder %s37, %s38
      %p52 = scmp.eq.s32.totalorder %s30, 1
      %p53 = por %p51, %p52
      %p55 = scmp.ne.s32.totalorder %s38, %s54
      %p56 = scmp.eq.s32.totalorder %s30, 0
      %p57 = por %p55, %p56
      %s58 = ssub.s32 %s24, %s31
      %p59 = scmp.eq.s32.totalorder %s58, 0
      %s61 = sadd.s32 %s60, 1
      %s62 = scalar_select %p59, %s60, %s61
      %p65 = pneg %p59
      %p66 = scmp.eq.s32.totalorder %s24, 1
      %p67 = por %p65, %p66
      %p68 = scmp.ne.s32.totalorder %s60, %s63
      %p69 = scmp.eq.s32.totalorder %s24, 0
      %p70 = por %p68, %p69
      %p71 = scmp.ne.s32.totalorder %s60, %s63
      %p72 = scmp.eq.s32.totalorder %s29, 1
      %p73 = por %p71, %p72
      %p74 = scmp.ne.s32.totalorder %s63, %s64
      %p75 = scmp.eq.s32.totalorder %s29, 0
      %p76 = por %p74, %p75
      %p77 = scmp.ne.s32.totalorder %s63, %s64
      %p78 = scmp.eq.s32.totalorder %s30, 1
      %p79 = por %p77, %p78
      %p81 = scmp.ne.s32.totalorder %s64, %s80
      %p82 = scmp.eq.s32.totalorder %s30, 0
      %p83 = por %p81, %p82
      %s85 = sadd.s32 %s84, 1
      %p88 = scmp.eq.s32.totalorder %s24, 1
      %p89 = scmp.ne.s32.totalorder %s84, %s86
      %p90 = scmp.eq.s32.totalorder %s24, 0
      %p91 = por %p89, %p90
      %p92 = scmp.ne.s32.totalorder %s84, %s86
      %p93 = scmp.eq.s32.totalorder %s29, 1
      %p94 = por %p92, %p93
      %p95 = scmp.ne.s32.totalorder %s86, %s87
      %p96 = scmp.eq.s32.totalorder %s29, 0
      %p97 = por %p95, %p96
      %p98 = scmp.ne.s32.totalorder %s86, %s87
      %p99 = scmp.eq.s32.totalorder %s30, 1
      %p100 = por %p98, %p99
      %p102 = scmp.ne.s32.totalorder %s87, %s101
      %p103 = scmp.eq.s32.totalorder %s30, 0
      %p104 = por %p102, %p103
      %s106 = sadd.s32 %s105, 1
      %p109 = scmp.eq.s32.totalorder %s24, 1
      %p110 = scmp.ne.s32.totalorder %s105, %s107
      %p111 = scmp.eq.s32.totalorder %s24, 0
      %p112 = por %p110, %p111
      %p113 = scmp.ne.s32.totalorder %s105, %s107
      %p114 = scmp.eq.s32.totalorder %s29, 1
      %p115 = por %p113, %p114
      %p116 = scmp.ne.s32.totalorder %s107, %s108
      %p117 = scmp.eq.s32.totalorder %s29, 0
      %p118 = por %p116, %p117
      %p119 = scmp.ne.s32.totalorder %s107, %s108
      %p120 = scmp.eq.s32.totalorder %s30, 1
      %p121 = por %p119, %p120
      %p123 = scmp.ne.s32.totalorder %s108, %s122
      %p124 = scmp.eq.s32.totalorder %s30, 0
      %p125 = por %p123, %p124
      %s127 = sadd.s32 %s126, 1
      %p130 = scmp.eq.s32.totalorder %s24, 1
      %p131 = scmp.ne.s32.totalorder %s126, %s128
      %p132 = scmp.eq.s32.totalorder %s24, 0
      %p133 = por %p131, %p132
      %p134 = scmp.ne.s32.totalorder %s126, %s128
      %p135 = scmp.eq.s32.totalorder %s29, 1
      %p136 = por %p134, %p135
      %p137 = scmp.ne.s32.totalorder %s128, %s129
      %p138 = scmp.eq.s32.totalorder %s29, 0
      %p139 = por %p137, %p138
      %p140 = scmp.ne.s32.totalorder %s128, %s129
      %p141 = scmp.eq.s32.totalorder %s30, 1
      %p142 = por %p140, %p141
      %p144 = scmp.ne.s32.totalorder %s129, %s143
      %p145 = scmp.eq.s32.totalorder %s30, 0
      %p146 = por %p144, %p145
      %s148 = sadd.s32 %s147, 1
      %p151 = scmp.eq.s32.totalorder %s24, 1
      %p152 = scmp.ne.s32.totalorder %s147, %s149
      %p153 = scmp.eq.s32.totalorder %s24, 0
      %p154 = por %p152, %p153
      %p155 = scmp.ne.s32.totalorder %s147, %s149
      %p156 = scmp.eq.s32.totalorder %s29, 1
      %p157 = por %p155, %p156
      %p158 = scmp.ne.s32.totalorder %s149, %s150
      %p159 = scmp.eq.s32.totalorder %s29, 0
      %p160 = por %p158, %p159
      %p161 = scmp.ne.s32.totalorder %s149, %s150
      %p162 = scmp.eq.s32.totalorder %s30, 1
      %p163 = por %p161, %p162
      %p165 = scmp.ne.s32.totalorder %s150, %s164
      %p166 = scmp.eq.s32.totalorder %s30, 0
      %p167 = por %p165, %p166
      %s169 = sadd.s32 %s168, 1
      %p172 = scmp.eq.s32.totalorder %s24, 1
      %p173 = scmp.ne.s32.totalorder %s168, %s170
      %p174 = scmp.eq.s32.totalorder %s24, 0
      %p175 = por %p173, %p174
      %p176 = scmp.ne.s32.totalorder %s168, %s170
      %p177 = scmp.eq.s32.totalorder %s29, 1
      %p178 = por %p176, %p177
      %p179 = scmp.ne.s32.totalorder %s170, %s171
      %p180 = scmp.eq.s32.totalorder %s29, 0
      %p181 = por %p179, %p180
      %p182 = scmp.ne.s32.totalorder %s170, %s171
      %p183 = scmp.eq.s32.totalorder %s30, 1
      %p184 = por %p182, %p183
      %p186 = scmp.ne.s32.totalorder %s171, %s185
      %p187 = scmp.eq.s32.totalorder %s30, 0
      %p188 = por %p186, %p187
      %s190 = sadd.s32 %s189, 1
      %p193 = scmp.eq.s32.totalorder %s24, 1
      %p194 = scmp.ne.s32.totalorder %s189, %s191
      %p195 = scmp.eq.s32.totalorder %s24, 0
      %p196 = por %p194, %p195
      %p197 = scmp.ne.s32.totalorder %s189, %s191
      %p198 = scmp.eq.s32.totalorder %s29, 1
      %p199 = por %p197, %p198
      %p200 = scmp.ne.s32.totalorder %s191, %s192
      %p201 = scmp.eq.s32.totalorder %s29, 0
      %p202 = por %p200, %p201
      %p203 = scmp.ne.s32.totalorder %s191, %s192
      %p204 = scmp.eq.s32.totalorder %s30, 1
      %p205 = por %p203, %p204
      %p207 = scmp.ne.s32.totalorder %s192, %s206
      %p208 = scmp.eq.s32.totalorder %s30, 0
      %p209 = por %p207, %p208
      %s211 = sadd.s32 %s210, 1
      %p214 = scmp.eq.s32.totalorder %s24, 1
      %p215 = scmp.ne.s32.totalorder %s210, %s212
      %p216 = scmp.eq.s32.totalorder %s24, 0
      %p217 = por %p215, %p216
      %p218 = scmp.ne.s32.totalorder %s210, %s212
      %p219 = scmp.eq.s32.totalorder %s29, 1
      %p220 = por %p218, %p219
      %p221 = scmp.ne.s32.totalorder %s212, %s213
      %p222 = scmp.eq.s32.totalorder %s29, 0
      %p223 = por %p221, %p222
      %p224 = scmp.ne.s32.totalorder %s212, %s213
      %p225 = scmp.eq.s32.totalorder %s30, 1
      %p226 = por %p224, %p225
      %p228 = scmp.ne.s32.totalorder %s213, %s227
      %p229 = scmp.eq.s32.totalorder %s30, 0
      %p230 = por %p228, %p229
      %s232 = sadd.s32 %s231, 1
      %p235 = scmp.eq.s32.totalorder %s24, 1
      %p236 = scmp.ne.s32.totalorder %s231, %s233
      %p237 = scmp.eq.s32.totalorder %s24, 0
      %p238 = por %p236, %p237
      %p239 = scmp.ne.s32.totalorder %s231, %s233
      %p240 = scmp.eq.s32.totalorder %s29, 1
      %p241 = por %p239, %p240
      %p242 = scmp.ne.s32.totalorder %s233, %s234
      %p243 = scmp.eq.s32.totalorder %s29, 0
      %p244 = por %p242, %p243
      %p245 = scmp.ne.s32.totalorder %s233, %s234
      %p246 = scmp.eq.s32.totalorder %s30, 1
      %p247 = por %p245, %p246
      %p249 = scmp.ne.s32.totalorder %s234, %s248
      %p250 = scmp.eq.s32.totalorder %s30, 0
      %p251 = por %p249, %p250
      %s252 = ssub.s32 %s24, %s31
      %p253 = scmp.eq.s32.totalorder %s252, 0
      %s255 = sadd.s32 %s254, 1
      %s256 = scalar_select %p253, %s254, %s255
      %p259 = pneg %p253
      %p260 = scmp.eq.s32.totalorder %s24, 1
      %p261 = por %p259, %p260
      %p262 = scmp.ne.s32.totalorder %s254, %s257
      %p263 = scmp.eq.s32.totalorder %s24, 0
      %p264 = por %p262, %p263
      %p265 = scmp.ne.s32.totalorder %s254, %s257
      %p266 = scmp.eq.s32.totalorder %s29, 1
      %p267 = por %p265, %p266
      %p268 = scmp.ne.s32.totalorder %s257, %s258
      %p269 = scmp.eq.s32.totalorder %s29, 0
      %p270 = por %p268, %p269
      %p271 = scmp.ne.s32.totalorder %s257, %s258
      %p272 = scmp.eq.s32.totalorder %s30, 1
      %p273 = por %p271, %p272
      %p275 = scmp.ne.s32.totalorder %s258, %s274
      %p276 = scmp.eq.s32.totalorder %s30, 0
      %p277 = por %p275, %p276
      %s278 = ssub.s32 %s24, %s31
      %p279 = scmp.eq.s32.totalorder %s278, 0
      %s281 = sadd.s32 %s280, 1
      %s282 = scalar_select %p279, %s280, %s281
      %p285 = pneg %p279
      %p286 = scmp.eq.s32.totalorder %s24, 1
      %p287 = por %p285, %p286
      %p288 = scmp.ne.s32.totalorder %s280, %s283
      %p289 = scmp.eq.s32.totalorder %s24, 0
      %p290 = por %p288, %p289
      %p291 = scmp.ne.s32.totalorder %s280, %s283
      %p292 = scmp.eq.s32.totalorder %s29, 1
      %p293 = por %p291, %p292
      %p294 = scmp.ne.s32.totalorder %s283, %s284
      %p295 = scmp.eq.s32.totalorder %s29, 0
      %p296 = por %p294, %p295
      %p297 = scmp.ne.s32.totalorder %s283, %s284
      %p298 = scmp.eq.s32.totalorder %s30, 1
      %p299 = por %p297, %p298
      %p301 = scmp.ne.s32.totalorder %s284, %s300
      %p302 = scmp.eq.s32.totalorder %s30, 0
      %p303 = por %p301, %p302
      %p304 = scmp.le.s32.totalorder 1, %s24
      %p305 = scmp.lt.s32.totalorder %s24, 3
      %p306 = pnand %p304, %p305
      %p307 = pneg %p306
      // Predicated region
      $region9: #{tpu_custom_call.1} parent=5 // pred_check
        _
      $region10: #{tpu_custom_call.1} parent=5 // pred_check_branch
        %309 = sbr.rel (%p306) target = $region12
      $region11: #{tpu_custom_call.1} parent=5 // pred_region
        %s310 = ssub.s32 %s24, 1
        // Predicated region
        $region13: #{tpu_custom_call.1} parent=11 // pred_check
          %p311 = pneg %p97
        $region14: #{tpu_custom_call.1} parent=11 // pred_check_branch
          %313 = sbr.rel (%p311) target = $region16
        $region15: #{tpu_custom_call.1} parent=11 // pred_region
          _
        $region16: #{tpu_custom_call.1} parent=11 // pred_fallthru
          _
        // Predicated region
        $region17: #{tpu_custom_call.1} parent=11 // pred_check
          %p314 = pneg %p118
        $region18: #{tpu_custom_call.1} parent=11 // pred_check_branch
          %316 = sbr.rel (%p314) target = $region20
        $region19: #{tpu_custom_call.1} parent=11 // pred_region
          _
        $region20: #{tpu_custom_call.1} parent=11 // pred_fallthru
          _
        // Predicated region
        $region21: #{tpu_custom_call.1} parent=11 // pred_check
          %p317 = pneg %p139
        $region22: #{tpu_custom_call.1} parent=11 // pred_check_branch
          %319 = sbr.rel (%p317) target = $region24
        $region23: #{tpu_custom_call.1} parent=11 // pred_region
          _
        $region24: #{tpu_custom_call.1} parent=11 // pred_fallthru
          _
        // Predicated region
        $region25: #{tpu_custom_call.1} parent=11 // pred_check
          %p320 = pneg %p160
        $region26: #{tpu_custom_call.1} parent=11 // pred_check_branch
          %322 = sbr.rel (%p320) target = $region28
        $region27: #{tpu_custom_call.1} parent=11 // pred_region
          _
        $region28: #{tpu_custom_call.1} parent=11 // pred_fallthru
          _
        // Predicated region
        $region29: #{tpu_custom_call.1} parent=11 // pred_check
          %p323 = pneg %p181
        $region30: #{tpu_custom_call.1} parent=11 // pred_check_branch
          %325 = sbr.rel (%p323) target = $region32
        $region31: #{tpu_custom_call.1} parent=11 // pred_region
          _
        $region32: #{tpu_custom_call.1} parent=11 // pred_fallthru
          _
        // Predicated region
        $region33: #{tpu_custom_call.1} parent=11 // pred_check
          %p326 = pneg %p202
        $region34: #{tpu_custom_call.1} parent=11 // pred_check_branch
          %328 = sbr.rel (%p326) target = $region36
        $region35: #{tpu_custom_call.1} parent=11 // pred_region
          _
        $region36: #{tpu_custom_call.1} parent=11 // pred_fallthru
          _
        // Predicated region
        $region37: #{tpu_custom_call.1} parent=11 // pred_check
          %p329 = pneg %p223
        $region38: #{tpu_custom_call.1} parent=11 // pred_check_branch
          %331 = sbr.rel (%p329) target = $region40
        $region39: #{tpu_custom_call.1} parent=11 // pred_region
          _
        $region40: #{tpu_custom_call.1} parent=11 // pred_fallthru
          _
        // Predicated region
        $region41: #{tpu_custom_call.1} parent=11 // pred_check
          %p332 = pneg %p244
        $region42: #{tpu_custom_call.1} parent=11 // pred_check_branch
          %334 = sbr.rel (%p332) target = $region44
        $region43: #{tpu_custom_call.1} parent=11 // pred_region
          _
        $region44: #{tpu_custom_call.1} parent=11 // pred_fallthru
          _
      $region12: #{tpu_custom_call.1} parent=5 // pred_fallthru
        _
      %p335 = scmp.lt.s32.totalorder %s24, 2
      // Predicated region
      $region45: #{tpu_custom_call.1} parent=5 // pred_check
        %p336 = pneg %p335
      $region46: #{tpu_custom_call.1} parent=5 // pred_check_branch
        %338 = sbr.rel (%p336) target = $region48
      $region47: #{tpu_custom_call.1} parent=5 // pred_region
        // Predicated region
        $region49: #{tpu_custom_call.1} parent=47 // pred_check
          %p339 = pneg %p44
        $region50: #{tpu_custom_call.1} parent=47 // pred_check_branch
          %341 = sbr.rel (%p339) target = $region52
        $region51: #{tpu_custom_call.1} parent=47 // pred_region
          %s342 = sand.u32 %s34, 1
          %s343 = scalar_lea.sflag [#allocation3], %s342
          %s344 = sand.u32 %s34, 1
          %s345 = smul.addr %s344, 256
          %s346 = scalar_lea.vmem [#allocation2], %s345
          %s347 = smul.u32 16, %s24
          %s349 = ssub.s32 4096, 4096
          %350 = vsyncadd %s343, %s349
          %s351 = smul.addr %s347, 2
          %s352 = smul.addr %s351, 128
          %s353 = scalar_lea.hbm %s0, %s352
          %s354 = sshll.u32 %s346, 4
          %s355 = int_to_ptr.vmem [resolvable:$true] %s354
          %360 = dma.hbm_to_vmem [thread:$0]  %s353, 4096, %s355, %s343, 256, 256, 16
        $region52: #{tpu_custom_call.1} parent=47 // pred_fallthru
          _
        // Predicated region
        $region53: #{tpu_custom_call.1} parent=47 // pred_check
          %p361 = pneg %p70
        $region54: #{tpu_custom_call.1} parent=47 // pred_check_branch
          %363 = sbr.rel (%p361) target = $region56
        $region55: #{tpu_custom_call.1} parent=47 // pred_region
          %s364 = smul.u32 16, %s24
          %p365 = scmp.lt.s32.totalorder %s364, 31
          %s366 = scalar_select %p365, %s364, 31
          %s367 = smul.addr %s366, 8
          %s368 = scalar_lea.vmem %s1, %s367
          %s369 = smul.u32 16, %s24
        $region56: #{tpu_custom_call.1} parent=47 // pred_fallthru
          _
      $region48: #{tpu_custom_call.1} parent=5 // pred_fallthru
        _
      %p370 = scmp.le.s32.totalorder 1, %s24
      %p371 = scmp.lt.s32.totalorder %s24, 3
      %p372 = pnand %p370, %p371
      %p373 = pneg %p372
      // Predicated region
      $region57: #{tpu_custom_call.1} parent=5 // pred_check
        _
      $region58: #{tpu_custom_call.1} parent=5 // pred_check_branch
        %375 = sbr.rel (%p372) target = $region60
      $region59: #{tpu_custom_call.1} parent=5 // pred_region
        %s376 = ssub.s32 %s24, 1
        %s377 = sand.u32 %s37, 1
        %s378 = scalar_lea.sflag [#allocation3], %s377
        %s379 = sand.u32 %s37, 1
        %s380 = smul.addr %s379, 256
        %s381 = scalar_lea.vmem [#allocation2], %s380
        // Predicated region
        $region61: #{tpu_custom_call.1} parent=59 // pred_check
          %p382 = pneg %p50
        $region62: #{tpu_custom_call.1} parent=59 // pred_check_branch
          %384 = sbr.rel (%p382) target = $region64
        $region63: #{tpu_custom_call.1} parent=59 // pred_region
          %385 = dma.done %s378, 4096
        $region64: #{tpu_custom_call.1} parent=59 // pred_fallthru
          _
        %s386 = sand.u32 %s37, 1
        %s387 = scalar_lea.sflag [#allocation3], %s386
        %s388 = sand.u32 %s37, 1
        %s389 = smul.addr %s388, 256
        %s390 = scalar_lea.vmem [#allocation2], %s389
        %p391 = pneg %p50
        %p392 = pneg %p47
        %s393 = smul.u32 16, %s29
        %p394 = scmp.lt.s32.totalorder %s393, 31
        %s395 = scalar_select %p394, %s393, 31
        %s396 = smul.addr %s395, 8
        %s397 = scalar_lea.vmem %s1, %s396
        %p398 = pneg %p76
        %p399 = pneg %p73
        %p400 = pneg %p97
        %p401 = pneg %p94
        %p402 = pneg %p118
        %p403 = pneg %p115
        %p404 = pneg %p139
        %p405 = pneg %p136
        %p406 = pneg %p160
        %p407 = pneg %p157
        %p408 = pneg %p181
        %p409 = pneg %p178
        %p410 = pneg %p202
        %p411 = pneg %p199
        %p412 = pneg %p223
        %p413 = pneg %p220
        %p414 = pneg %p244
        %p415 = pneg %p241
        %p416 = pneg %p270
        %p417 = pneg %p267
        %s418 = sand.u32 %s257, 1
        %s419 = scalar_lea.sflag [#allocation4], %s418
        %s420 = sand.u32 %s257, 1
        %s421 = smul.addr %s420, 256
        %s422 = scalar_lea.vmem [#allocation5], %s421
        %p423 = pneg %p296
        %p424 = pneg %p293
        %s425 = smul.u32 16, %s29
        %p426 = scmp.lt.s32.totalorder %s425, 31
        %s427 = scalar_select %p426, %s425, 31
        %s428 = smul.addr %s427, 8
        %s429 = scalar_lea.vmem %s11, %s428
        %s430 = smul.u32 16, %s29
        %s431 = smul.u32 16, %s29
        %p432 = scmp.lt.s32.totalorder %s431, 31
        %s433 = scalar_select %p432, %s431, 31
        %s434 = smul.addr %s433, 8
        %s435 = scalar_lea.vmem %s1, %s434
        %s436 = smul.u32 16, %s29
        %s437 = smul.u32 16, %s29
        %s438 = smul.u32 16, %s29
        %p439 = scmp.lt.s32.totalorder %s438, 31
        %s440 = scalar_select %p439, %s438, 31
        %s441 = smul.addr %s440, 8
        %s442 = scalar_lea.vmem %s11, %s441
        %s443 = smul.u32 16, %s29
        %v445 = vld [vmem:[%s381] sm:$0xff]
        %v446 = vld [vmem:[%s381 + $0x8] sm:$0xff]
        %v447 = vld [vmem:[%s381 + $0x10] sm:$0xff]
        %v448 = vld [vmem:[%s381 + $0x18] sm:$0xff]
        %v449 = vld [vmem:[%s381 + $0x20] sm:$0xff]
        %v450 = vld [vmem:[%s381 + $0x28] sm:$0xff]
        %v451 = vld [vmem:[%s381 + $0x30] sm:$0xff]
        %v452 = vld [vmem:[%s381 + $0x38] sm:$0xff]
        %v453 = vld [vmem:[%s381 + $0x40] sm:$0xff]
        %v454 = vld [vmem:[%s381 + $0x48] sm:$0xff]
        %v455 = vld [vmem:[%s381 + $0x50] sm:$0xff]
        %v456 = vld [vmem:[%s381 + $0x58] sm:$0xff]
        %v457 = vld [vmem:[%s381 + $0x60] sm:$0xff]
        %v458 = vld [vmem:[%s381 + $0x68] sm:$0xff]
        %v459 = vld [vmem:[%s381 + $0x70] sm:$0xff]
        %v460 = vld [vmem:[%s381 + $0x78] sm:$0xff]
        %v461 = vld [vmem:[%s381 + $0x80] sm:$0xff]
        %v462 = vld [vmem:[%s381 + $0x88] sm:$0xff]
        %v463 = vld [vmem:[%s381 + $0x90] sm:$0xff]
        %v464 = vld [vmem:[%s381 + $0x98] sm:$0xff]
        %v465 = vld [vmem:[%s381 + $0xa0] sm:$0xff]
        %v466 = vld [vmem:[%s381 + $0xa8] sm:$0xff]
        %v467 = vld [vmem:[%s381 + $0xb0] sm:$0xff]
        %v468 = vld [vmem:[%s381 + $0xb8] sm:$0xff]
        %v469 = vld [vmem:[%s381 + $0xc0] sm:$0xff]
        %v470 = vld [vmem:[%s381 + $0xc8] sm:$0xff]
        %v471 = vld [vmem:[%s381 + $0xd0] sm:$0xff]
        %v472 = vld [vmem:[%s381 + $0xd8] sm:$0xff]
        %v473 = vld [vmem:[%s381 + $0xe0] sm:$0xff]
        %v474 = vld [vmem:[%s381 + $0xe8] sm:$0xff]
        %v475 = vld [vmem:[%s381 + $0xf0] sm:$0xff]
        %v476 = vld [vmem:[%s381 + $0xf8] sm:$0xff]
        %v477 = vpack.c.bf16 %v447, %v445
        %v478 = vpack.c.bf16 %v448, %v446
        %v479 = vpack.c.bf16 %v451, %v449
        %v480 = vpack.c.bf16 %v452, %v450
        %v481 = vpack.c.bf16 %v455, %v453
        %v482 = vpack.c.bf16 %v456, %v454
        %v483 = vpack.c.bf16 %v459, %v457
        %v484 = vpack.c.bf16 %v460, %v458
        %v485 = vpack.c.bf16 %v463, %v461
        %v486 = vpack.c.bf16 %v464, %v462
        %v487 = vpack.c.bf16 %v467, %v465
        %v488 = vpack.c.bf16 %v468, %v466
        %v489 = vpack.c.bf16 %v471, %v469
        %v490 = vpack.c.bf16 %v472, %v470
        %v491 = vpack.c.bf16 %v475, %v473
        %v492 = vpack.c.bf16 %v476, %v474
        %v493 = vld [vmem:[%s2] sm:$0xf]
        %v494 = vld [vmem:[%s2 + $0x4] sm:$0xf]
        %v495 = vld [vmem:[%s2 + $0x8] sm:$0xf]
        %v496 = vld [vmem:[%s2 + $0xc] sm:$0xf]
        %v497 = vld [vmem:[%s2 + $0x10] sm:$0xf]
        %v498 = vld [vmem:[%s2 + $0x14] sm:$0xf]
        %v499 = vld [vmem:[%s2 + $0x18] sm:$0xf]
        %v500 = vld [vmem:[%s2 + $0x1c] sm:$0xf]
        %v501 = vld [vmem:[%s2 + $0x20] sm:$0xf]
        %v502 = vld [vmem:[%s2 + $0x24] sm:$0xf]
        %v503 = vld [vmem:[%s2 + $0x28] sm:$0xf]
        %v504 = vld [vmem:[%s2 + $0x2c] sm:$0xf]
        %v505 = vld [vmem:[%s2 + $0x30] sm:$0xf]
        %v506 = vld [vmem:[%s2 + $0x34] sm:$0xf]
        %v507 = vld [vmem:[%s2 + $0x38] sm:$0xf]
        %v508 = vld [vmem:[%s2 + $0x3c] sm:$0xf]
        %v509 = vld [vmem:[%s2 + $0x40] sm:$0xf]
        %v510 = vld [vmem:[%s2 + $0x44] sm:$0xf]
        %v511 = vld [vmem:[%s2 + $0x48] sm:$0xf]
        %v512 = vld [vmem:[%s2 + $0x4c] sm:$0xf]
        %v513 = vld [vmem:[%s2 + $0x50] sm:$0xf]
        %v514 = vld [vmem:[%s2 + $0x54] sm:$0xf]
        %v515 = vld [vmem:[%s2 + $0x58] sm:$0xf]
        %v516 = vld [vmem:[%s2 + $0x5c] sm:$0xf]
        %v517 = vld [vmem:[%s2 + $0x60] sm:$0xf]
        %v518 = vld [vmem:[%s2 + $0x64] sm:$0xf]
        %v519 = vld [vmem:[%s2 + $0x68] sm:$0xf]
        %v520 = vld [vmem:[%s2 + $0x6c] sm:$0xf]
        %v521 = vld [vmem:[%s2 + $0x70] sm:$0xf]
        %v522 = vld [vmem:[%s2 + $0x74] sm:$0xf]
        %v523 = vld [vmem:[%s2 + $0x78] sm:$0xf]
        %v524 = vld [vmem:[%s2 + $0x7c] sm:$0xf]
        %v525 = vld [vmem:[%s3] sm:$0x1]
        %v527 = vlaneseq
        %v528 = vshrl.u32 %v527, 7
        %v529 = vsub.s32 0, %v528
        %v530 = vrot.slane %v525, %v529
        %v564 = vunpack.c.l.b16 %v493
        %v565 = vunpack.c.l.b16 %v494
        %v566 = vunpack.c.l.b16 %v495
        %v567 = vunpack.c.l.b16 %v496
        %v568 = vunpack.c.l.b16 %v497
        %v569 = vunpack.c.l.b16 %v498
        %v570 = vunpack.c.l.b16 %v499
        %v571 = vunpack.c.l.b16 %v500
        %v572 = vunpack.c.l.b16 %v501
        %v573 = vunpack.c.l.b16 %v502
        %v574 = vunpack.c.l.b16 %v503
        %v575 = vunpack.c.l.b16 %v504
        %v576 = vunpack.c.l.b16 %v505
        %v577 = vunpack.c.l.b16 %v506
        %v578 = vunpack.c.l.b16 %v507
        %v579 = vunpack.c.l.b16 %v508
        %v580 = vunpack.c.l.b16 %v509
        %v581 = vunpack.c.l.b16 %v510
        %v582 = vunpack.c.l.b16 %v511
        %v583 = vunpack.c.l.b16 %v512
        %v584 = vunpack.c.l.b16 %v513
        %v585 = vunpack.c.l.b16 %v514
        %v586 = vunpack.c.l.b16 %v515
        %v587 = vunpack.c.l.b16 %v516
        %v588 = vunpack.c.l.b16 %v517
        %v589 = vunpack.c.l.b16 %v518
        %v590 = vunpack.c.l.b16 %v519
        %v591 = vunpack.c.l.b16 %v520
        %v592 = vunpack.c.l.b16 %v521
        %v593 = vunpack.c.l.b16 %v522
        %v594 = vunpack.c.l.b16 %v523
        %v595 = vunpack.c.l.b16 %v524
        %v596 = vpack.c.b16 %v565, %v564
        %v597 = vpack.c.b16 %v567, %v566
        %v598 = vpack.c.b16 %v569, %v568
        %v599 = vpack.c.b16 %v571, %v570
        %v600 = vpack.c.b16 %v573, %v572
        %v601 = vpack.c.b16 %v575, %v574
        %v602 = vpack.c.b16 %v577, %v576
        %v603 = vpack.c.b16 %v579, %v578
        %v604 = vpack.c.b16 %v581, %v580
        %v605 = vpack.c.b16 %v583, %v582
        %v606 = vpack.c.b16 %v585, %v584
        %v607 = vpack.c.b16 %v587, %v586
        %v608 = vpack.c.b16 %v589, %v588
        %v609 = vpack.c.b16 %v591, %v590
        %v610 = vpack.c.b16 %v593, %v592
        %v611 = vpack.c.b16 %v595, %v594
        %628 = vmatprep.subr.bf16.mxu0 0
        %629 = vmatpush1.bf16.msra.mxu0 %v596
        %630 = vmatprep.subr.bf16.mxu0 0
        %631 = vmatpush1.bf16.msra.mxu0 %v597
        %632 = vmatprep.subr.bf16.mxu0 0
        %633 = vmatpush1.bf16.msra.mxu0 %v598
        %634 = vmatprep.subr.bf16.mxu0 0
        %635 = vmatpush1.bf16.msra.mxu0 %v599
        %636 = vmatprep.subr.bf16.mxu0 0
        %637 = vmatpush1.bf16.msra.mxu0 %v600
        %638 = vmatprep.subr.bf16.mxu0 0
        %639 = vmatpush1.bf16.msra.mxu0 %v601
        %640 = vmatprep.subr.bf16.mxu0 0
        %641 = vmatpush1.bf16.msra.mxu0 %v602
        %642 = vmatprep.subr.bf16.mxu0 0
        %643 = vmatpush1.bf16.msra.mxu0 %v603
        %644 = vmatprep.subr.bf16.mxu0 0
        %645 = vmatpush1.bf16.msra.mxu0 %v604
        %646 = vmatprep.subr.bf16.mxu0 0
        %647 = vmatpush1.bf16.msra.mxu0 %v605
        %648 = vmatprep.subr.bf16.mxu0 0
        %649 = vmatpush1.bf16.msra.mxu0 %v606
        %650 = vmatprep.subr.bf16.mxu0 0
        %651 = vmatpush1.bf16.msra.mxu0 %v607
        %652 = vmatprep.subr.bf16.mxu0 0
        %653 = vmatpush1.bf16.msra.mxu0 %v608
        %654 = vmatprep.subr.bf16.mxu0 0
        %655 = vmatpush1.bf16.msra.mxu0 %v609
        %656 = vmatprep.subr.bf16.mxu0 0
        %657 = vmatpush1.bf16.msra.mxu0 %v610
        %658 = vmatprep.subr.bf16.mxu0 0
        %659 = vmatpush1.bf16.msra.mxu0 %v611
        %660 = vmatprep.mubr.bf16.mxu0 %v478
        %661 = vmatmul.mubr.bf16.gmra.mrb[0].mxu0 %v477
        %v662 = vpop.f32.mrb[0].mxu0
        %v663 = vadd.f32 %v530, %v662
        %v664 = vpop.f32.mrb[0].mxu0
        %v665 = vpop.f32.mrb[0].mxu0
        %v666 = vadd.f32 %v530, %v665
        %v667 = vpop.f32.mrb[0].mxu0
        %668 = vmatprep.mubr.bf16.mxu0 %v480
        %669 = vmatmul.mubr.bf16.gmra.mrb[0].mxu0 %v479
        %v670 = vpop.f32.mrb[0].mxu0
        %v671 = vadd.f32 %v530, %v670
        %v672 = vpop.f32.mrb[0].mxu0
        %v673 = vpop.f32.mrb[0].mxu0
        %v674 = vadd.f32 %v530, %v673
        %v675 = vpop.f32.mrb[0].mxu0
        %676 = vmatprep.mubr.bf16.mxu0 %v482
        %677 = vmatmul.mubr.bf16.gmra.mrb[0].mxu0 %v481
        %v678 = vpop.f32.mrb[0].mxu0
        %v679 = vadd.f32 %v530, %v678
        %v680 = vpop.f32.mrb[0].mxu0
        %v681 = vpop.f32.mrb[0].mxu0
        %v682 = vadd.f32 %v530, %v681
        %v683 = vpop.f32.mrb[0].mxu0
        %684 = vmatprep.mubr.bf16.mxu0 %v484
        %685 = vmatmul.mubr.bf16.gmra.mrb[0].mxu0 %v483
        %v686 = vpop.f32.mrb[0].mxu0
        %v687 = vadd.f32 %v530, %v686
        %v688 = vpop.f32.mrb[0].mxu0
        %v689 = vpop.f32.mrb[0].mxu0
        %v690 = vadd.f32 %v530, %v689
        %v691 = vpop.f32.mrb[0].mxu0
        %692 = vmatprep.mubr.bf16.mxu0 %v486
        %693 = vmatmul.mubr.bf16.gmra.mrb[0].mxu0 %v485
        %v694 = vpop.f32.mrb[0].mxu0
        %v695 = vadd.f32 %v530, %v694
        %v696 = vpop.f32.mrb[0].mxu0
        %v697 = vpop.f32.mrb[0].mxu0
        %v698 = vadd.f32 %v530, %v697
        %v699 = vpop.f32.mrb[0].mxu0
        %700 = vmatprep.mubr.bf16.mxu0 %v488
        %701 = vmatmul.mubr.bf16.gmra.mrb[0].mxu0 %v487
        %v702 = vpop.f32.mrb[0].mxu0
        %v703 = vadd.f32 %v530, %v702
        %v704 = vpop.f32.mrb[0].mxu0
        %v705 = vpop.f32.mrb[0].mxu0
        %v706 = vadd.f32 %v530, %v705
        %v707 = vpop.f32.mrb[0].mxu0
        %708 = vmatprep.mubr.bf16.mxu0 %v490
        %709 = vmatmul.mubr.bf16.gmra.mrb[0].mxu0 %v489
        %v710 = vpop.f32.mrb[0].mxu0
        %v711 = vadd.f32 %v530, %v710
        %v712 = vpop.f32.mrb[0].mxu0
        %v713 = vpop.f32.mrb[0].mxu0
        %v714 = vadd.f32 %v530, %v713
        %v715 = vpop.f32.mrb[0].mxu0
        %716 = vmatprep.mubr.bf16.mxu0 %v492
        %717 = vmatmul.mubr.bf16.gmra.mrb[0].mxu0 %v491
        %v718 = vpop.f32.mrb[0].mxu0
        %v719 = vadd.f32 %v530, %v718
        %v720 = vpop.f32.mrb[0].mxu0
        %v721 = vpop.f32.mrb[0].mxu0
        %v722 = vadd.f32 %v530, %v721
        %v723 = vpop.f32.mrb[0].mxu0
        %724 = vdwg.mxu0
        %v725 = vmax.f32 %v663, 0.0
        %v726 = vmax.f32 %v666, 0.0
        %v727 = vmax.f32 %v671, 0.0
        %v728 = vmax.f32 %v674, 0.0
        %v729 = vmax.f32 %v679, 0.0
        %v730 = vmax.f32 %v682, 0.0
        %v731 = vmax.f32 %v687, 0.0
        %v732 = vmax.f32 %v690, 0.0
        %v733 = vmax.f32 %v695, 0.0
        %v734 = vmax.f32 %v698, 0.0
        %v735 = vmax.f32 %v703, 0.0
        %v736 = vmax.f32 %v706, 0.0
        %v737 = vmax.f32 %v711, 0.0
        %v738 = vmax.f32 %v714, 0.0
        %v739 = vmax.f32 %v719, 0.0
        %v740 = vmax.f32 %v722, 0.0
        %v741 = vpack.c.bf16 %v726, %v725
        %v742 = vpack.c.bf16 %v728, %v727
        %v743 = vpack.c.bf16 %v730, %v729
        %v744 = vpack.c.bf16 %v732, %v731
        %v745 = vpack.c.bf16 %v734, %v733
        %v746 = vpack.c.bf16 %v736, %v735
        %v747 = vpack.c.bf16 %v738, %v737
        %v748 = vpack.c.bf16 %v740, %v739
        %v749 = vld [vmem:[%s4] sm:$0xf]
        %v750 = vld [vmem:[%s4 + $0x4] sm:$0xf]
        %v751 = vld [vmem:[%s4 + $0x8] sm:$0xf]
        %v752 = vld [vmem:[%s4 + $0xc] sm:$0xf]
        %v753 = vld [vmem:[%s4 + $0x10] sm:$0xf]
        %v754 = vld [vmem:[%s4 + $0x14] sm:$0xf]
        %v755 = vld [vmem:[%s4 + $0x18] sm:$0xf]
        %v756 = vld [vmem:[%s4 + $0x1c] sm:$0xf]
        %v757 = vld [vmem:[%s4 + $0x20] sm:$0xf]
        %v758 = vld [vmem:[%s4 + $0x24] sm:$0xf]
        %v759 = vld [vmem:[%s4 + $0x28] sm:$0xf]
        %v760 = vld [vmem:[%s4 + $0x2c] sm:$0xf]
        %v761 = vld [vmem:[%s4 + $0x30] sm:$0xf]
        %v762 = vld [vmem:[%s4 + $0x34] sm:$0xf]
        %v763 = vld [vmem:[%s4 + $0x38] sm:$0xf]
        %v764 = vld [vmem:[%s4 + $0x3c] sm:$0xf]
        %v765 = vld [vmem:[%s5] sm:$0x1]
        %v767 = vlaneseq
        %v768 = vshrl.u32 %v767, 7
        %v769 = vsub.s32 0, %v768
        %v770 = vrot.slane %v765, %v769
        %v788 = vunpack.c.l.b16 %v749
        %v789 = vunpack.c.l.b16 %v750
        %v790 = vunpack.c.l.b16 %v751
        %v791 = vunpack.c.l.b16 %v752
        %v792 = vunpack.c.l.b16 %v753
        %v793 = vunpack.c.l.b16 %v754
        %v794 = vunpack.c.l.b16 %v755
        %v795 = vunpack.c.l.b16 %v756
        %v796 = vunpack.c.l.b16 %v757
        %v797 = vunpack.c.l.b16 %v758
        %v798 = vunpack.c.l.b16 %v759
        %v799 = vunpack.c.l.b16 %v760
        %v800 = vunpack.c.l.b16 %v761
        %v801 = vunpack.c.l.b16 %v762
        %v802 = vunpack.c.l.b16 %v763
        %v803 = vunpack.c.l.b16 %v764
        %v804 = vpack.c.b16 %v789, %v788
        %v805 = vpack.c.b16 %v791, %v790
        %v806 = vpack.c.b16 %v793, %v792
        %v807 = vpack.c.b16 %v795, %v794
        %v808 = vpack.c.b16 %v797, %v796
        %v809 = vpack.c.b16 %v799, %v798
        %v810 = vpack.c.b16 %v801, %v800
        %v811 = vpack.c.b16 %v803, %v802
        %820 = vmatprep.subr.bf16.mxu0 0
        %821 = vmatpush1.bf16.msra.mxu0 %v804
        %822 = vmatprep.subr.bf16.mxu0 0
        %823 = vmatpush1.bf16.msra.mxu0 %v805
        %824 = vmatprep.subr.bf16.mxu0 0
        %825 = vmatpush1.bf16.msra.mxu0 %v806
        %826 = vmatprep.subr.bf16.mxu0 0
        %827 = vmatpush1.bf16.msra.mxu0 %v807
        %828 = vmatprep.subr.bf16.mxu0 0
        %829 = vmatpush1.bf16.msra.mxu0 %v808
        %830 = vmatprep.subr.bf16.mxu0 0
        %831 = vmatpush1.bf16.msra.mxu0 %v809
        %832 = vmatprep.subr.bf16.mxu0 0
        %833 = vmatpush1.bf16.msra.mxu0 %v810
        %834 = vmatprep.subr.bf16.mxu0 0
        %835 = vmatpush1.bf16.msra.mxu0 %v811
        %836 = vmatprep.subr.bf16.mxu0 0
        %837 = vmatpush1.bf16.msra.mxu0 0
        %838 = vmatprep.subr.bf16.mxu0 0
        %839 = vmatpush1.bf16.msra.mxu0 0
        %840 = vmatprep.subr.bf16.mxu0 0
        %841 = vmatpush1.bf16.msra.mxu0 0
        %842 = vmatprep.subr.bf16.mxu0 0
        %843 = vmatpush1.bf16.msra.mxu0 0
        %844 = vmatprep.subr.bf16.mxu0 0
        %845 = vmatpush1.bf16.msra.mxu0 0
        %846 = vmatprep.subr.bf16.mxu0 0
        %847 = vmatpush1.bf16.msra.mxu0 0
        %848 = vmatprep.subr.bf16.mxu0 0
        %849 = vmatpush1.bf16.msra.mxu0 0
        %850 = vmatprep.subr.bf16.mxu0 0
        %851 = vmatpush1.bf16.msra.mxu0 0
        %852 = vmatprep.mubr.bf16.mxu0 0
        %853 = vmatmul.mubr.bf16.gmra.mrb[0].mxu0 %v741
        %v854 = vpop.f32.mrb[0].mxu0
        %v855 = vadd.f32 %v770, %v854
        %v856 = vpop.f32.mrb[0].mxu0
        %v857 = vpop.f32.mrb[0].mxu0
        %v858 = vadd.f32 %v770, %v857
        %v859 = vpop.f32.mrb[0].mxu0
        %860 = vmatprep.mubr.bf16.mxu0 0
        %861 = vmatmul.mubr.bf16.gmra.mrb[0].mxu0 %v742
        %v862 = vpop.f32.mrb[0].mxu0
        %v863 = vadd.f32 %v770, %v862
        %v864 = vpop.f32.mrb[0].mxu0
        %v865 = vpop.f32.mrb[0].mxu0
        %v866 = vadd.f32 %v770, %v865
        %v867 = vpop.f32.mrb[0].mxu0
        %868 = vmatprep.mubr.bf16.mxu0 0
        %869 = vmatmul.mubr.bf16.gmra.mrb[0].mxu0 %v743
        %v870 = vpop.f32.mrb[0].mxu0
        %v871 = vadd.f32 %v770, %v870
        %v872 = vpop.f32.mrb[0].mxu0
        %v873 = vpop.f32.mrb[0].mxu0
        %v874 = vadd.f32 %v770, %v873
        %v875 = vpop.f32.mrb[0].mxu0
        %876 = vmatprep.mubr.bf16.mxu0 0
        %877 = vmatmul.mubr.bf16.gmra.mrb[0].mxu0 %v744
        %v878 = vpop.f32.mrb[0].mxu0
        %v879 = vadd.f32 %v770, %v878
        %v880 = vpop.f32.mrb[0].mxu0
        %v881 = vpop.f32.mrb[0].mxu0
        %v882 = vadd.f32 %v770, %v881
        %v883 = vpop.f32.mrb[0].mxu0
        %884 = vmatprep.mubr.bf16.mxu0 0
        %885 = vmatmul.mubr.bf16.gmra.mrb[0].mxu0 %v745
        %v886 = vpop.f32.mrb[0].mxu0
        %v887 = vadd.f32 %v770, %v886
        %v888 = vpop.f32.mrb[0].mxu0
        %v889 = vpop.f32.mrb[0].mxu0
        %v890 = vadd.f32 %v770, %v889
        %v891 = vpop.f32.mrb[0].mxu0
        %892 = vmatprep.mubr.bf16.mxu0 0
        %893 = vmatmul.mubr.bf16.gmra.mrb[0].mxu0 %v746
        %v894 = vpop.f32.mrb[0].mxu0
        %v895 = vadd.f32 %v770, %v894
        %v896 = vpop.f32.mrb[0].mxu0
        %v897 = vpop.f32.mrb[0].mxu0
        %v898 = vadd.f32 %v770, %v897
        %v899 = vpop.f32.mrb[0].mxu0
        %900 = vmatprep.mubr.bf16.mxu0 0
        %901 = vmatmul.mubr.bf16.gmra.mrb[0].mxu0 %v747
        %v902 = vpop.f32.mrb[0].mxu0
        %v903 = vadd.f32 %v770, %v902
        %v904 = vpop.f32.mrb[0].mxu0
        %v905 = vpop.f32.mrb[0].mxu0
        %v906 = vadd.f32 %v770, %v905
        %v907 = vpop.f32.mrb[0].mxu0
        %908 = vmatprep.mubr.bf16.mxu0 0
        %909 = vmatmul.mubr.bf16.gmra.mrb[0].mxu0 %v748
        %v910 = vpop.f32.mrb[0].mxu0
        %v911 = vadd.f32 %v770, %v910
        %v912 = vpop.f32.mrb[0].mxu0
        %v913 = vpop.f32.mrb[0].mxu0
        %v914 = vadd.f32 %v770, %v913
        %v915 = vpop.f32.mrb[0].mxu0
        %916 = vdwg.mxu0
        %v917 = vmul.f32 %v855, 0.5
        %v918 = vmul.f32 %v858, 0.5
        %v919 = vmul.f32 %v863, 0.5
        %v920 = vmul.f32 %v866, 0.5
        %v921 = vmul.f32 %v871, 0.5
        %v922 = vmul.f32 %v874, 0.5
        %v923 = vmul.f32 %v879, 0.5
        %v924 = vmul.f32 %v882, 0.5
        %v925 = vmul.f32 %v887, 0.5
        %v926 = vmul.f32 %v890, 0.5
        %v927 = vmul.f32 %v895, 0.5
        %v928 = vmul.f32 %v898, 0.5
        %v929 = vmul.f32 %v903, 0.5
        %v930 = vmul.f32 %v906, 0.5
        %v931 = vmul.f32 %v911, 0.5
        %v932 = vmul.f32 %v914, 0.5
        %v933 = vmul.f32 %v917, 1.442695
        %v934 = vpow.pop %v933
        %v935 = vmul.f32 %v918, 1.442695
        %v936 = vpow.pop %v935
        %v937 = vmul.f32 %v919, 1.442695
        %v938 = vpow.pop %v937
        %v939 = vmul.f32 %v920, 1.442695
        %v940 = vpow.pop %v939
        %v941 = vmul.f32 %v921, 1.442695
        %v942 = vpow.pop %v941
        %v943 = vmul.f32 %v922, 1.442695
        %v944 = vpow.pop %v943
        %v945 = vmul.f32 %v923, 1.442695
        %v946 = vpow.pop %v945
        %v947 = vmul.f32 %v924, 1.442695
        %v948 = vpow.pop %v947
        %v949 = vmul.f32 %v925, 1.442695
        %v950 = vpow.pop %v949
        %v951 = vmul.f32 %v926, 1.442695
        %v952 = vpow.pop %v951
        %v953 = vmul.f32 %v927, 1.442695
        %v954 = vpow.pop %v953
        %v955 = vmul.f32 %v928, 1.442695
        %v956 = vpow.pop %v955
        %v957 = vmul.f32 %v929, 1.442695
        %v958 = vpow.pop %v957
        %v959 = vmul.f32 %v930, 1.442695
        %v960 = vpow.pop %v959
        %v961 = vmul.f32 %v931, 1.442695
        %v962 = vpow.pop %v961
        %v963 = vmul.f32 %v932, 1.442695
        %v964 = vpow.pop %v963
        %v965 = vld [vmem:[%s435] sm:$0xff]
        %v966 = vld [vmem:[%s435 + $0x8] sm:$0xff]
        %v967 = vld [vmem:[%s435 + $0x10] sm:$0xff]
        %v968 = vld [vmem:[%s435 + $0x18] sm:$0xff]
        %v969 = vld [vmem:[%s435 + $0x20] sm:$0xff]
        %v970 = vld [vmem:[%s435 + $0x28] sm:$0xff]
        %v971 = vld [vmem:[%s435 + $0x30] sm:$0xff]
        %v972 = vld [vmem:[%s435 + $0x38] sm:$0xff]
        %v973 = vld [vmem:[%s435 + $0x40] sm:$0xff]
        %v974 = vld [vmem:[%s435 + $0x48] sm:$0xff]
        %v975 = vld [vmem:[%s435 + $0x50] sm:$0xff]
        %v976 = vld [vmem:[%s435 + $0x58] sm:$0xff]
        %v977 = vld [vmem:[%s435 + $0x60] sm:$0xff]
        %v978 = vld [vmem:[%s435 + $0x68] sm:$0xff]
        %v979 = vld [vmem:[%s435 + $0x70] sm:$0xff]
        %v980 = vld [vmem:[%s435 + $0x78] sm:$0xff]
        %997 = vrot.lane.b32.xlu0 %v934, 96
        %v998 = vpop.permute.xlu0 %997
        %999 = vrot.lane.b32.xlu0 %v936, 96
        %v1000 = vpop.permute.xlu0 %999
        %1001 = vrot.lane.b32.xlu0 %v938, 96
        %v1002 = vpop.permute.xlu0 %1001
        %1003 = vrot.lane.b32.xlu0 %v940, 96
        %v1004 = vpop.permute.xlu0 %1003
        %1005 = vrot.lane.b32.xlu0 %v942, 96
        %v1006 = vpop.permute.xlu0 %1005
        %1007 = vrot.lane.b32.xlu0 %v944, 96
        %v1008 = vpop.permute.xlu0 %1007
        %1009 = vrot.lane.b32.xlu0 %v946, 96
        %v1010 = vpop.permute.xlu0 %1009
        %1011 = vrot.lane.b32.xlu0 %v948, 96
        %v1012 = vpop.permute.xlu0 %1011
        %1013 = vrot.lane.b32.xlu0 %v950, 96
        %v1014 = vpop.permute.xlu0 %1013
        %1015 = vrot.lane.b32.xlu0 %v952, 96
        %v1016 = vpop.permute.xlu0 %1015
        %1017 = vrot.lane.b32.xlu0 %v954, 96
        %v1018 = vpop.permute.xlu0 %1017
        %1019 = vrot.lane.b32.xlu0 %v956, 96
        %v1020 = vpop.permute.xlu0 %1019
        %1021 = vrot.lane.b32.xlu0 %v958, 96
        %v1022 = vpop.permute.xlu0 %1021
        %1023 = vrot.lane.b32.xlu0 %v960, 96
        %v1024 = vpop.permute.xlu0 %1023
        %1025 = vrot.lane.b32.xlu0 %v962, 96
        %v1026 = vpop.permute.xlu0 %1025
        %1027 = vrot.lane.b32.xlu0 %v964, 96
        %v1028 = vpop.permute.xlu0 %1027
        %v1045 = vmul.f32 %v965, %v998
        %v1046 = vmul.f32 %v966, %v1000
        %v1047 = vmul.f32 %v967, %v1002
        %v1048 = vmul.f32 %v968, %v1004
        %v1049 = vmul.f32 %v969, %v1006
        %v1050 = vmul.f32 %v970, %v1008
        %v1051 = vmul.f32 %v971, %v1010
        %v1052 = vmul.f32 %v972, %v1012
        %v1053 = vmul.f32 %v973, %v1014
        %v1054 = vmul.f32 %v974, %v1016
        %v1055 = vmul.f32 %v975, %v1018
        %v1056 = vmul.f32 %v976, %v1020
        %v1057 = vmul.f32 %v977, %v1022
        %v1058 = vmul.f32 %v978, %v1024
        %v1059 = vmul.f32 %v979, %v1026
        %v1060 = vmul.f32 %v980, %v1028
        %v1061 = vadd.f32 %v1045, %v855
        %v1062 = vadd.f32 %v1046, %v858
        %v1063 = vadd.f32 %v1047, %v863
        %v1064 = vadd.f32 %v1048, %v866
        %v1065 = vadd.f32 %v1049, %v871
        %v1066 = vadd.f32 %v1050, %v874
        %v1067 = vadd.f32 %v1051, %v879
        %v1068 = vadd.f32 %v1052, %v882
        %v1069 = vadd.f32 %v1053, %v887
        %v1070 = vadd.f32 %v1054, %v890
        %v1071 = vadd.f32 %v1055, %v895
        %v1072 = vadd.f32 %v1056, %v898
        %v1073 = vadd.f32 %v1057, %v903
        %v1074 = vadd.f32 %v1058, %v906
        %v1075 = vadd.f32 %v1059, %v911
        %v1076 = vadd.f32 %v1060, %v914
        %v1077 = vpack.c.bf16 %v1062, %v1061
        %v1078 = vpack.c.bf16 %v1064, %v1063
        %v1079 = vpack.c.bf16 %v1066, %v1065
        %v1080 = vpack.c.bf16 %v1068, %v1067
        %v1081 = vpack.c.bf16 %v1070, %v1069
        %v1082 = vpack.c.bf16 %v1072, %v1071
        %v1083 = vpack.c.bf16 %v1074, %v1073
        %v1084 = vpack.c.bf16 %v1076, %v1075
        %v1085 = vld [vmem:[%s6] sm:$0xf]
        %v1086 = vld [vmem:[%s6 + $0x4] sm:$0xf]
        %v1087 = vld [vmem:[%s6 + $0x8] sm:$0xf]
        %v1088 = vld [vmem:[%s6 + $0xc] sm:$0xf]
        %v1089 = vld [vmem:[%s7] sm:$0x1]
        %v1091 = vlaneseq
        %v1092 = vshrl.u32 %v1091, 7
        %v1093 = vsub.s32 0, %v1092
        %v1094 = vrot.slane %v1089, %v1093
        %v1100 = vunpack.c.l.b16 %v1085
        %v1101 = vunpack.c.l.b16 %v1086
        %v1102 = vunpack.c.l.b16 %v1087
        %v1103 = vunpack.c.l.b16 %v1088
        %v1104 = vpack.c.b16 %v1101, %v1100
        %v1105 = vpack.c.b16 %v1103, %v1102
        %vm1108 = vcmask 261120
        %v1110 = vsel %vm1108, %v1077, 0
        %v1113 = vsel %vm1108, %v1078, 0
        %v1116 = vsel %vm1108, %v1079, 0
        %v1119 = vsel %vm1108, %v1080, 0
        %v1122 = vsel %vm1108, %v1081, 0
        %v1125 = vsel %vm1108, %v1082, 0
        %v1128 = vsel %vm1108, %v1083, 0
        %v1131 = vsel %vm1108, %v1084, 0
        %1133 = vmatprep.subr.bf16.mxu0 0
        %1134 = vmatpush1.bf16.msra.mxu0 %v1104
        %1135 = vmatprep.subr.bf16.mxu0 0
        %1136 = vmatpush1.bf16.msra.mxu0 %v1105
        %1137 = vmatprep.subr.bf16.mxu0 0
        %1138 = vmatpush1.bf16.msra.mxu0 0
        %1139 = vmatprep.subr.bf16.mxu0 0
        %1140 = vmatpush1.bf16.msra.mxu0 0
        %1141 = vmatprep.subr.bf16.mxu0 0
        %1142 = vmatpush1.bf16.msra.mxu0 0
        %1143 = vmatprep.subr.bf16.mxu0 0
        %1144 = vmatpush1.bf16.msra.mxu0 0
        %1145 = vmatprep.subr.bf16.mxu0 0
        %1146 = vmatpush1.bf16.msra.mxu0 0
        %1147 = vmatprep.subr.bf16.mxu0 0
        %1148 = vmatpush1.bf16.msra.mxu0 0
        %1149 = vmatprep.subr.bf16.mxu0 0
        %1150 = vmatpush1.bf16.msra.mxu0 0
        %1151 = vmatprep.subr.bf16.mxu0 0
        %1152 = vmatpush1.bf16.msra.mxu0 0
        %1153 = vmatprep.subr.bf16.mxu0 0
        %1154 = vmatpush1.bf16.msra.mxu0 0
        %1155 = vmatprep.subr.bf16.mxu0 0
        %1156 = vmatpush1.bf16.msra.mxu0 0
        %1157 = vmatprep.subr.bf16.mxu0 0
        %1158 = vmatpush1.bf16.msra.mxu0 0
        %1159 = vmatprep.subr.bf16.mxu0 0
        %1160 = vmatpush1.bf16.msra.mxu0 0
        %1161 = vmatprep.subr.bf16.mxu0 0
        %1162 = vmatpush1.bf16.msra.mxu0 0
        %1163 = vmatprep.subr.bf16.mxu0 0
        %1164 = vmatpush1.bf16.msra.mxu0 0
        %1165 = vmatprep.mubr.bf16.mxu0 0
        %1166 = vmatmul.mubr.bf16.gmra.mrb[0].mxu0 %v1110
        %v1167 = vpop.f32.mrb[0].mxu0
        %v1168 = vadd.f32 %v1094, %v1167
        %v1169 = vpop.f32.mrb[0].mxu0
        %v1170 = vpop.f32.mrb[0].mxu0
        %v1171 = vadd.f32 %v1094, %v1170
        %v1172 = vpop.f32.mrb[0].mxu0
        %1173 = vmatprep.mubr.bf16.mxu0 0
        %1174 = vmatmul.mubr.bf16.gmra.mrb[0].mxu0 %v1113
        %v1175 = vpop.f32.mrb[0].mxu0
        %v1176 = vadd.f32 %v1094, %v1175
        %v1177 = vpop.f32.mrb[0].mxu0
        %v1178 = vpop.f32.mrb[0].mxu0
        %v1179 = vadd.f32 %v1094, %v1178
        %v1180 = vpop.f32.mrb[0].mxu0
        %1181 = vmatprep.mubr.bf16.mxu0 0
        %1182 = vmatmul.mubr.bf16.gmra.mrb[0].mxu0 %v1116
        %v1183 = vpop.f32.mrb[0].mxu0
        %v1184 = vadd.f32 %v1094, %v1183
        %v1185 = vpop.f32.mrb[0].mxu0
        %v1186 = vpop.f32.mrb[0].mxu0
        %v1187 = vadd.f32 %v1094, %v1186
        %v1188 = vpop.f32.mrb[0].mxu0
        %1189 = vmatprep.mubr.bf16.mxu0 0
        %1190 = vmatmul.mubr.bf16.gmra.mrb[0].mxu0 %v1119
        %v1191 = vpop.f32.mrb[0].mxu0
        %v1192 = vadd.f32 %v1094, %v1191
        %v1193 = vpop.f32.mrb[0].mxu0
        %v1194 = vpop.f32.mrb[0].mxu0
        %v1195 = vadd.f32 %v1094, %v1194
        %v1196 = vpop.f32.mrb[0].mxu0
        %1197 = vmatprep.mubr.bf16.mxu0 0
        %1198 = vmatmul.mubr.bf16.gmra.mrb[0].mxu0 %v1122
        %v1199 = vpop.f32.mrb[0].mxu0
        %v1200 = vadd.f32 %v1094, %v1199
        %v1201 = vpop.f32.mrb[0].mxu0
        %v1202 = vpop.f32.mrb[0].mxu0
        %v1203 = vadd.f32 %v1094, %v1202
        %v1204 = vpop.f32.mrb[0].mxu0
        %1205 = vmatprep.mubr.bf16.mxu0 0
        %1206 = vmatmul.mubr.bf16.gmra.mrb[0].mxu0 %v1125
        %v1207 = vpop.f32.mrb[0].mxu0
        %v1208 = vadd.f32 %v1094, %v1207
        %v1209 = vpop.f32.mrb[0].mxu0
        %v1210 = vpop.f32.mrb[0].mxu0
        %v1211 = vadd.f32 %v1094, %v1210
        %v1212 = vpop.f32.mrb[0].mxu0
        %1213 = vmatprep.mubr.bf16.mxu0 0
        %1214 = vmatmul.mubr.bf16.gmra.mrb[0].mxu0 %v1128
        %v1215 = vpop.f32.mrb[0].mxu0
        %v1216 = vadd.f32 %v1094, %v1215
        %v1217 = vpop.f32.mrb[0].mxu0
        %v1218 = vpop.f32.mrb[0].mxu0
        %v1219 = vadd.f32 %v1094, %v1218
        %v1220 = vpop.f32.mrb[0].mxu0
        %1221 = vmatprep.mubr.bf16.mxu0 0
        %1222 = vmatmul.mubr.bf16.gmra.mrb[0].mxu0 %v1131
        %v1223 = vpop.f32.mrb[0].mxu0
        %v1224 = vadd.f32 %v1094, %v1223
        %v1225 = vpop.f32.mrb[0].mxu0
        %v1226 = vpop.f32.mrb[0].mxu0
        %v1227 = vadd.f32 %v1094, %v1226
        %v1228 = vpop.f32.mrb[0].mxu0
        %1229 = vdwg.mxu0
        %v1230 = vmax.f32 %v1168, 0.0
        %v1231 = vmax.f32 %v1171, 0.0
        %v1232 = vmax.f32 %v1176, 0.0
        %v1233 = vmax.f32 %v1179, 0.0
        %v1234 = vmax.f32 %v1184, 0.0
        %v1235 = vmax.f32 %v1187, 0.0
        %v1236 = vmax.f32 %v1192, 0.0
        %v1237 = vmax.f32 %v1195, 0.0
        %v1238 = vmax.f32 %v1200, 0.0
        %v1239 = vmax.f32 %v1203, 0.0
        %v1240 = vmax.f32 %v1208, 0.0
        %v1241 = vmax.f32 %v1211, 0.0
        %v1242 = vmax.f32 %v1216, 0.0
        %v1243 = vmax.f32 %v1219, 0.0
        %v1244 = vmax.f32 %v1224, 0.0
        %v1245 = vmax.f32 %v1227, 0.0
        %v1246 = vpack.c.bf16 %v1231, %v1230
        %v1247 = vpack.c.bf16 %v1233, %v1232
        %v1248 = vpack.c.bf16 %v1235, %v1234
        %v1249 = vpack.c.bf16 %v1237, %v1236
        %v1250 = vpack.c.bf16 %v1239, %v1238
        %v1251 = vpack.c.bf16 %v1241, %v1240
        %v1252 = vpack.c.bf16 %v1243, %v1242
        %v1253 = vpack.c.bf16 %v1245, %v1244
        %v1254 = vld [vmem:[%s8] sm:$0xff]
        %v1255 = vld [vmem:[%s8 + $0x8] sm:$0xff]
        %v1256 = vld [vmem:[%s8 + $0x10] sm:$0xff]
        %v1257 = vld [vmem:[%s8 + $0x18] sm:$0xff]
        %v1258 = vld [vmem:[%s8 + $0x20] sm:$0xff]
        %v1259 = vld [vmem:[%s8 + $0x28] sm:$0xff]
        %v1260 = vld [vmem:[%s8 + $0x30] sm:$0xff]
        %v1261 = vld [vmem:[%s8 + $0x38] sm:$0xff]
        %v1262 = vld [vmem:[%s8 + $0x40] sm:$0xff]
        %v1263 = vld [vmem:[%s8 + $0x48] sm:$0xff]
        %v1264 = vld [vmem:[%s8 + $0x50] sm:$0xff]
        %v1265 = vld [vmem:[%s8 + $0x58] sm:$0xff]
        %v1266 = vld [vmem:[%s8 + $0x60] sm:$0xff]
        %v1267 = vld [vmem:[%s8 + $0x68] sm:$0xff]
        %v1268 = vld [vmem:[%s8 + $0x70] sm:$0xff]
        %v1269 = vld [vmem:[%s8 + $0x78] sm:$0xff]
        %v1270 = vld [vmem:[%s9] sm:$0x3]
        %v1272 = vlaneseq
        %v1273 = vshrl.u32 %v1272, 7
        %v1274 = vsub.s32 0, %v1273
        %v1275 = vrot.slane %v1270, %v1274
        %v1276 = vlaneseq
        %v1277 = vshrl.u32 %v1276, 7
        %v1278 = vsub.s32 1, %v1277
        %v1279 = vrot.slane %v1270, %v1278
        %v1298 = vunpack.c.l.b16 %v1254
        %v1299 = vunpack.c.h.b16 %v1254
        %v1300 = vunpack.c.l.b16 %v1255
        %v1301 = vunpack.c.h.b16 %v1255
        %v1302 = vunpack.c.l.b16 %v1256
        %v1303 = vunpack.c.h.b16 %v1256
        %v1304 = vunpack.c.l.b16 %v1257
        %v1305 = vunpack.c.h.b16 %v1257
        %v1306 = vunpack.c.l.b16 %v1258
        %v1307 = vunpack.c.h.b16 %v1258
        %v1308 = vunpack.c.l.b16 %v1259
        %v1309 = vunpack.c.h.b16 %v1259
        %v1310 = vunpack.c.l.b16 %v1260
        %v1311 = vunpack.c.h.b16 %v1260
        %v1312 = vunpack.c.l.b16 %v1261
        %v1313 = vunpack.c.h.b16 %v1261
        %v1314 = vunpack.c.l.b16 %v1262
        %v1315 = vunpack.c.h.b16 %v1262
        %v1316 = vunpack.c.l.b16 %v1263
        %v1317 = vunpack.c.h.b16 %v1263
        %v1318 = vunpack.c.l.b16 %v1264
        %v1319 = vunpack.c.h.b16 %v1264
        %v1320 = vunpack.c.l.b16 %v1265
        %v1321 = vunpack.c.h.b16 %v1265
        %v1322 = vunpack.c.l.b16 %v1266
        %v1323 = vunpack.c.h.b16 %v1266
        %v1324 = vunpack.c.l.b16 %v1267
        %v1325 = vunpack.c.h.b16 %v1267
        %v1326 = vunpack.c.l.b16 %v1268
        %v1327 = vunpack.c.h.b16 %v1268
        %v1328 = vunpack.c.l.b16 %v1269
        %v1329 = vunpack.c.h.b16 %v1269
        %v1330 = vpack.c.b16 %v1300, %v1298
        %v1331 = vpack.c.b16 %v1301, %v1299
        %v1332 = vpack.c.b16 %v1304, %v1302
        %v1333 = vpack.c.b16 %v1305, %v1303
        %v1334 = vpack.c.b16 %v1308, %v1306
        %v1335 = vpack.c.b16 %v1309, %v1307
        %v1336 = vpack.c.b16 %v1312, %v1310
        %v1337 = vpack.c.b16 %v1313, %v1311
        %v1338 = vpack.c.b16 %v1316, %v1314
        %v1339 = vpack.c.b16 %v1317, %v1315
        %v1340 = vpack.c.b16 %v1320, %v1318
        %v1341 = vpack.c.b16 %v1321, %v1319
        %v1342 = vpack.c.b16 %v1324, %v1322
        %v1343 = vpack.c.b16 %v1325, %v1323
        %v1344 = vpack.c.b16 %v1328, %v1326
        %v1345 = vpack.c.b16 %v1329, %v1327
        %1362 = vmatprep.subr.bf16.mxu0 %v1331
        %1363 = vmatpush1.bf16.msra.mxu0 %v1330
        %1364 = vmatprep.subr.bf16.mxu0 %v1333
        %1365 = vmatpush1.bf16.msra.mxu0 %v1332
        %1366 = vmatprep.subr.bf16.mxu0 %v1335
        %1367 = vmatpush1.bf16.msra.mxu0 %v1334
        %1368 = vmatprep.subr.bf16.mxu0 %v1337
        %1369 = vmatpush1.bf16.msra.mxu0 %v1336
        %1370 = vmatprep.subr.bf16.mxu0 %v1339
        %1371 = vmatpush1.bf16.msra.mxu0 %v1338
        %1372 = vmatprep.subr.bf16.mxu0 %v1341
        %1373 = vmatpush1.bf16.msra.mxu0 %v1340
        %1374 = vmatprep.subr.bf16.mxu0 %v1343
        %1375 = vmatpush1.bf16.msra.mxu0 %v1342
        %1376 = vmatprep.subr.bf16.mxu0 %v1345
        %1377 = vmatpush1.bf16.msra.mxu0 %v1344
        %1378 = vmatprep.subr.bf16.mxu0 0
        %1379 = vmatpush1.bf16.msra.mxu0 0
        %1380 = vmatprep.subr.bf16.mxu0 0
        %1381 = vmatpush1.bf16.msra.mxu0 0
        %1382 = vmatprep.subr.bf16.mxu0 0
        %1383 = vmatpush1.bf16.msra.mxu0 0
        %1384 = vmatprep.subr.bf16.mxu0 0
        %1385 = vmatpush1.bf16.msra.mxu0 0
        %1386 = vmatprep.subr.bf16.mxu0 0
        %1387 = vmatpush1.bf16.msra.mxu0 0
        %1388 = vmatprep.subr.bf16.mxu0 0
        %1389 = vmatpush1.bf16.msra.mxu0 0
        %1390 = vmatprep.subr.bf16.mxu0 0
        %1391 = vmatpush1.bf16.msra.mxu0 0
        %1392 = vmatprep.subr.bf16.mxu0 0
        %1393 = vmatpush1.bf16.msra.mxu0 0
        %1394 = vmatprep.mubr.bf16.mxu0 0
        %1395 = vmatmul.mubr.bf16.gmra.mrb[0].mxu0 %v1246
        %v1396 = vpop.f32.mrb[0].mxu0
        %v1397 = vadd.f32 %v1275, %v1396
        %v1398 = vpop.f32.mrb[0].mxu0
        %v1399 = vadd.f32 %v1279, %v1398
        %v1400 = vpop.f32.mrb[0].mxu0
        %v1401 = vadd.f32 %v1275, %v1400
        %v1402 = vpop.f32.mrb[0].mxu0
        %v1403 = vadd.f32 %v1279, %v1402
        %1404 = vmatprep.mubr.bf16.mxu0 0
        %1405 = vmatmul.mubr.bf16.gmra.mrb[0].mxu0 %v1247
        %v1406 = vpop.f32.mrb[0].mxu0
        %v1407 = vadd.f32 %v1275, %v1406
        %v1408 = vpop.f32.mrb[0].mxu0
        %v1409 = vadd.f32 %v1279, %v1408
        %v1410 = vpop.f32.mrb[0].mxu0
        %v1411 = vadd.f32 %v1275, %v1410
        %v1412 = vpop.f32.mrb[0].mxu0
        %v1413 = vadd.f32 %v1279, %v1412
        %1414 = vmatprep.mubr.bf16.mxu0 0
        %1415 = vmatmul.mubr.bf16.gmra.mrb[0].mxu0 %v1248
        %v1416 = vpop.f32.mrb[0].mxu0
        %v1417 = vadd.f32 %v1275, %v1416
        %v1418 = vpop.f32.mrb[0].mxu0
        %v1419 = vadd.f32 %v1279, %v1418
        %v1420 = vpop.f32.mrb[0].mxu0
        %v1421 = vadd.f32 %v1275, %v1420
        %v1422 = vpop.f32.mrb[0].mxu0
        %v1423 = vadd.f32 %v1279, %v1422
        %1424 = vmatprep.mubr.bf16.mxu0 0
        %1425 = vmatmul.mubr.bf16.gmra.mrb[0].mxu0 %v1249
        %v1426 = vpop.f32.mrb[0].mxu0
        %v1427 = vadd.f32 %v1275, %v1426
        %v1428 = vpop.f32.mrb[0].mxu0
        %v1429 = vadd.f32 %v1279, %v1428
        %v1430 = vpop.f32.mrb[0].mxu0
        %v1431 = vadd.f32 %v1275, %v1430
        %v1432 = vpop.f32.mrb[0].mxu0
        %v1433 = vadd.f32 %v1279, %v1432
        %1434 = vmatprep.mubr.bf16.mxu0 0
        %1435 = vmatmul.mubr.bf16.gmra.mrb[0].mxu0 %v1250
        %v1436 = vpop.f32.mrb[0].mxu0
        %v1437 = vadd.f32 %v1275, %v1436
        %v1438 = vpop.f32.mrb[0].mxu0
        %v1439 = vadd.f32 %v1279, %v1438
        %v1440 = vpop.f32.mrb[0].mxu0
        %v1441 = vadd.f32 %v1275, %v1440
        %v1442 = vpop.f32.mrb[0].mxu0
        %v1443 = vadd.f32 %v1279, %v1442
        %1444 = vmatprep.mubr.bf16.mxu0 0
        %1445 = vmatmul.mubr.bf16.gmra.mrb[0].mxu0 %v1251
        %v1446 = vpop.f32.mrb[0].mxu0
        %v1447 = vadd.f32 %v1275, %v1446
        %v1448 = vpop.f32.mrb[0].mxu0
        %v1449 = vadd.f32 %v1279, %v1448
        %v1450 = vpop.f32.mrb[0].mxu0
        %v1451 = vadd.f32 %v1275, %v1450
        %v1452 = vpop.f32.mrb[0].mxu0
        %v1453 = vadd.f32 %v1279, %v1452
        %1454 = vmatprep.mubr.bf16.mxu0 0
        %1455 = vmatmul.mubr.bf16.gmra.mrb[0].mxu0 %v1252
        %v1456 = vpop.f32.mrb[0].mxu0
        %v1457 = vadd.f32 %v1275, %v1456
        %v1458 = vpop.f32.mrb[0].mxu0
        %v1459 = vadd.f32 %v1279, %v1458
        %v1460 = vpop.f32.mrb[0].mxu0
        %v1461 = vadd.f32 %v1275, %v1460
        %v1462 = vpop.f32.mrb[0].mxu0
        %v1463 = vadd.f32 %v1279, %v1462
        %1464 = vmatprep.mubr.bf16.mxu0 0
        %1465 = vmatmul.mubr.bf16.gmra.mrb[0].mxu0 %v1253
        %v1466 = vpop.f32.mrb[0].mxu0
        %v1467 = vadd.f32 %v1275, %v1466
        %v1468 = vpop.f32.mrb[0].mxu0
        %v1469 = vadd.f32 %v1279, %v1468
        %v1470 = vpop.f32.mrb[0].mxu0
        %v1471 = vadd.f32 %v1275, %v1470
        %v1472 = vpop.f32.mrb[0].mxu0
        %v1473 = vadd.f32 %v1279, %v1472
        %1474 = vdwg.mxu0
        %v1475 = vxor.u32 %v1397, 2147483648
        %v1476 = vxor.u32 %v1399, 2147483648
        %v1477 = vxor.u32 %v1401, 2147483648
        %v1478 = vxor.u32 %v1403, 2147483648
        %v1479 = vxor.u32 %v1407, 2147483648
        %v1480 = vxor.u32 %v1409, 2147483648
        %v1481 = vxor.u32 %v1411, 2147483648
        %v1482 = vxor.u32 %v1413, 2147483648
        %v1483 = vxor.u32 %v1417, 2147483648
        %v1484 = vxor.u32 %v1419, 2147483648
        %v1485 = vxor.u32 %v1421, 2147483648
        %v1486 = vxor.u32 %v1423, 2147483648
        %v1487 = vxor.u32 %v1427, 2147483648
        %v1488 = vxor.u32 %v1429, 2147483648
        %v1489 = vxor.u32 %v1431, 2147483648
        %v1490 = vxor.u32 %v1433, 2147483648
        %v1491 = vxor.u32 %v1437, 2147483648
        %v1492 = vxor.u32 %v1439, 2147483648
        %v1493 = vxor.u32 %v1441, 2147483648
        %v1494 = vxor.u32 %v1443, 2147483648
        %v1495 = vxor.u32 %v1447, 2147483648
        %v1496 = vxor.u32 %v1449, 2147483648
        %v1497 = vxor.u32 %v1451, 2147483648
        %v1498 = vxor.u32 %v1453, 2147483648
        %v1499 = vxor.u32 %v1457, 2147483648
        %v1500 = vxor.u32 %v1459, 2147483648
        %v1501 = vxor.u32 %v1461, 2147483648
        %v1502 = vxor.u32 %v1463, 2147483648
        %v1503 = vxor.u32 %v1467, 2147483648
        %v1504 = vxor.u32 %v1469, 2147483648
        %v1505 = vxor.u32 %v1471, 2147483648
        %v1506 = vxor.u32 %v1473, 2147483648
        %v1507 = vmul.f32 %v1475, 1.442695
        %v1508 = vpow.pop %v1507
        %v1509 = vmul.f32 %v1476, 1.442695
        %v1510 = vpow.pop %v1509
        %v1511 = vmul.f32 %v1477, 1.442695
        %v1512 = vpow.pop %v1511
        %v1513 = vmul.f32 %v1478, 1.442695
        %v1514 = vpow.pop %v1513
        %v1515 = vmul.f32 %v1479, 1.442695
        %v1516 = vpow.pop %v1515
        %v1517 = vmul.f32 %v1480, 1.442695
        %v1518 = vpow.pop %v1517
        %v1519 = vmul.f32 %v1481, 1.442695
        %v1520 = vpow.pop %v1519
        %v1521 = vmul.f32 %v1482, 1.442695
        %v1522 = vpow.pop %v1521
        %v1523 = vmul.f32 %v1483, 1.442695
        %v1524 = vpow.pop %v1523
        %v1525 = vmul.f32 %v1484, 1.442695
        %v1526 = vpow.pop %v1525
        %v1527 = vmul.f32 %v1485, 1.442695
        %v1528 = vpow.pop %v1527
        %v1529 = vmul.f32 %v1486, 1.442695
        %v1530 = vpow.pop %v1529
        %v1531 = vmul.f32 %v1487, 1.442695
        %v1532 = vpow.pop %v1531
        %v1533 = vmul.f32 %v1488, 1.442695
        %v1534 = vpow.pop %v1533
        %v1535 = vmul.f32 %v1489, 1.442695
        %v1536 = vpow.pop %v1535
        %v1537 = vmul.f32 %v1490, 1.442695
        %v1538 = vpow.pop %v1537
        %v1539 = vmul.f32 %v1491, 1.442695
        %v1540 = vpow.pop %v1539
        %v1541 = vmul.f32 %v1492, 1.442695
        %v1542 = vpow.pop %v1541
        %v1543 = vmul.f32 %v1493, 1.442695
        %v1544 = vpow.pop %v1543
        %v1545 = vmul.f32 %v1494, 1.442695
        %v1546 = vpow.pop %v1545
        %v1547 = vmul.f32 %v1495, 1.442695
        %v1548 = vpow.pop %v1547
        %v1549 = vmul.f32 %v1496, 1.442695
        %v1550 = vpow.pop %v1549
        %v1551 = vmul.f32 %v1497, 1.442695
        %v1552 = vpow.pop %v1551
        %v1553 = vmul.f32 %v1498, 1.442695
        %v1554 = vpow.pop %v1553
        %v1555 = vmul.f32 %v1499, 1.442695
        %v1556 = vpow.pop %v1555
        %v1557 = vmul.f32 %v1500, 1.442695
        %v1558 = vpow.pop %v1557
        %v1559 = vmul.f32 %v1501, 1.442695
        %v1560 = vpow.pop %v1559
        %v1561 = vmul.f32 %v1502, 1.442695
        %v1562 = vpow.pop %v1561
        %v1563 = vmul.f32 %v1503, 1.442695
        %v1564 = vpow.pop %v1563
        %v1565 = vmul.f32 %v1504, 1.442695
        %v1566 = vpow.pop %v1565
        %v1567 = vmul.f32 %v1505, 1.442695
        %v1568 = vpow.pop %v1567
        %v1569 = vmul.f32 %v1506, 1.442695
        %v1570 = vpow.pop %v1569
        %v1571 = vadd.f32 %v1508, 1.0
        %v1572 = vadd.f32 %v1510, 1.0
        %v1573 = vadd.f32 %v1512, 1.0
        %v1574 = vadd.f32 %v1514, 1.0
        %v1575 = vadd.f32 %v1516, 1.0
        %v1576 = vadd.f32 %v1518, 1.0
        %v1577 = vadd.f32 %v1520, 1.0
        %v1578 = vadd.f32 %v1522, 1.0
        %v1579 = vadd.f32 %v1524, 1.0
        %v1580 = vadd.f32 %v1526, 1.0
        %v1581 = vadd.f32 %v1528, 1.0
        %v1582 = vadd.f32 %v1530, 1.0
        %v1583 = vadd.f32 %v1532, 1.0
        %v1584 = vadd.f32 %v1534, 1.0
        %v1585 = vadd.f32 %v1536, 1.0
        %v1586 = vadd.f32 %v1538, 1.0
        %v1587 = vadd.f32 %v1540, 1.0
        %v1588 = vadd.f32 %v1542, 1.0
        %v1589 = vadd.f32 %v1544, 1.0
        %v1590 = vadd.f32 %v1546, 1.0
        %v1591 = vadd.f32 %v1548, 1.0
        %v1592 = vadd.f32 %v1550, 1.0
        %v1593 = vadd.f32 %v1552, 1.0
        %v1594 = vadd.f32 %v1554, 1.0
        %v1595 = vadd.f32 %v1556, 1.0
        %v1596 = vadd.f32 %v1558, 1.0
        %v1597 = vadd.f32 %v1560, 1.0
        %v1598 = vadd.f32 %v1562, 1.0
        %v1599 = vadd.f32 %v1564, 1.0
        %v1600 = vadd.f32 %v1566, 1.0
        %v1601 = vadd.f32 %v1568, 1.0
        %v1602 = vadd.f32 %v1570, 1.0
        %v1603 = vrcp.pop %v1571
        %v1604 = vmul.f32 1.0, %v1603
        %v1605 = vrcp.pop %v1572
        %v1606 = vmul.f32 1.0, %v1605
        %v1607 = vrcp.pop %v1573
        %v1608 = vmul.f32 1.0, %v1607
        %v1609 = vrcp.pop %v1574
        %v1610 = vmul.f32 1.0, %v1609
        %v1611 = vrcp.pop %v1575
        %v1612 = vmul.f32 1.0, %v1611
        %v1613 = vrcp.pop %v1576
        %v1614 = vmul.f32 1.0, %v1613
        %v1615 = vrcp.pop %v1577
        %v1616 = vmul.f32 1.0, %v1615
        %v1617 = vrcp.pop %v1578
        %v1618 = vmul.f32 1.0, %v1617
        %v1619 = vrcp.pop %v1579
        %v1620 = vmul.f32 1.0, %v1619
        %v1621 = vrcp.pop %v1580
        %v1622 = vmul.f32 1.0, %v1621
        %v1623 = vrcp.pop %v1581
        %v1624 = vmul.f32 1.0, %v1623
        %v1625 = vrcp.pop %v1582
        %v1626 = vmul.f32 1.0, %v1625
        %v1627 = vrcp.pop %v1583
        %v1628 = vmul.f32 1.0, %v1627
        %v1629 = vrcp.pop %v1584
        %v1630 = vmul.f32 1.0, %v1629
        %v1631 = vrcp.pop %v1585
        %v1632 = vmul.f32 1.0, %v1631
        %v1633 = vrcp.pop %v1586
        %v1634 = vmul.f32 1.0, %v1633
        %v1635 = vrcp.pop %v1587
        %v1636 = vmul.f32 1.0, %v1635
        %v1637 = vrcp.pop %v1588
        %v1638 = vmul.f32 1.0, %v1637
        %v1639 = vrcp.pop %v1589
        %v1640 = vmul.f32 1.0, %v1639
        %v1641 = vrcp.pop %v1590
        %v1642 = vmul.f32 1.0, %v1641
        %v1643 = vrcp.pop %v1591
        %v1644 = vmul.f32 1.0, %v1643
        %v1645 = vrcp.pop %v1592
        %v1646 = vmul.f32 1.0, %v1645
        %v1647 = vrcp.pop %v1593
        %v1648 = vmul.f32 1.0, %v1647
        %v1649 = vrcp.pop %v1594
        %v1650 = vmul.f32 1.0, %v1649
        %v1651 = vrcp.pop %v1595
        %v1652 = vmul.f32 1.0, %v1651
        %v1653 = vrcp.pop %v1596
        %v1654 = vmul.f32 1.0, %v1653
        %v1655 = vrcp.pop %v1597
        %v1656 = vmul.f32 1.0, %v1655
        %v1657 = vrcp.pop %v1598
        %v1658 = vmul.f32 1.0, %v1657
        %v1659 = vrcp.pop %v1599
        %v1660 = vmul.f32 1.0, %v1659
        %v1661 = vrcp.pop %v1600
        %v1662 = vmul.f32 1.0, %v1661
        %v1663 = vrcp.pop %v1601
        %v1664 = vmul.f32 1.0, %v1663
        %v1665 = vrcp.pop %v1602
        %v1666 = vmul.f32 1.0, %v1665
        %1667 = vst [vmem:[%s422] sm:$0xff] %v1604
        %1668 = vst [vmem:[%s422 + $0x8] sm:$0xff] %v1606
        %1669 = vst [vmem:[%s422 + $0x10] sm:$0xff] %v1608
        %1670 = vst [vmem:[%s422 + $0x18] sm:$0xff] %v1610
        %1671 = vst [vmem:[%s422 + $0x20] sm:$0xff] %v1612
        %1672 = vst [vmem:[%s422 + $0x28] sm:$0xff] %v1614
        %1673 = vst [vmem:[%s422 + $0x30] sm:$0xff] %v1616
        %1674 = vst [vmem:[%s422 + $0x38] sm:$0xff] %v1618
        %1675 = vst [vmem:[%s422 + $0x40] sm:$0xff] %v1620
        %1676 = vst [vmem:[%s422 + $0x48] sm:$0xff] %v1622
        %1677 = vst [vmem:[%s422 + $0x50] sm:$0xff] %v1624
        %1678 = vst [vmem:[%s422 + $0x58] sm:$0xff] %v1626
        %1679 = vst [vmem:[%s422 + $0x60] sm:$0xff] %v1628
        %1680 = vst [vmem:[%s422 + $0x68] sm:$0xff] %v1630
        %1681 = vst [vmem:[%s422 + $0x70] sm:$0xff] %v1632
        %1682 = vst [vmem:[%s422 + $0x78] sm:$0xff] %v1634
        %1683 = vst [vmem:[%s422 + $0x80] sm:$0xff] %v1636
        %1684 = vst [vmem:[%s422 + $0x88] sm:$0xff] %v1638
        %1685 = vst [vmem:[%s422 + $0x90] sm:$0xff] %v1640
        %1686 = vst [vmem:[%s422 + $0x98] sm:$0xff] %v1642
        %1687 = vst [vmem:[%s422 + $0xa0] sm:$0xff] %v1644
        %1688 = vst [vmem:[%s422 + $0xa8] sm:$0xff] %v1646
        %1689 = vst [vmem:[%s422 + $0xb0] sm:$0xff] %v1648
        %1690 = vst [vmem:[%s422 + $0xb8] sm:$0xff] %v1650
        %1691 = vst [vmem:[%s422 + $0xc0] sm:$0xff] %v1652
        %1692 = vst [vmem:[%s422 + $0xc8] sm:$0xff] %v1654
        %1693 = vst [vmem:[%s422 + $0xd0] sm:$0xff] %v1656
        %1694 = vst [vmem:[%s422 + $0xd8] sm:$0xff] %v1658
        %1695 = vst [vmem:[%s422 + $0xe0] sm:$0xff] %v1660
        %1696 = vst [vmem:[%s422 + $0xe8] sm:$0xff] %v1662
        %1697 = vst [vmem:[%s422 + $0xf0] sm:$0xff] %v1664
        %1698 = vst [vmem:[%s422 + $0xf8] sm:$0xff] %v1666
        %vm1699 = vcmask 523264
        %1700 = vst.msk [vmem:[%s442] sm:$0xff] %vm1699, %v855
        %1701 = vst.msk [vmem:[%s442 + $0x8] sm:$0xff] %vm1699, %v858
        %1702 = vst.msk [vmem:[%s442 + $0x10] sm:$0xff] %vm1699, %v863
        %1703 = vst.msk [vmem:[%s442 + $0x18] sm:$0xff] %vm1699, %v866
        %1704 = vst.msk [vmem:[%s442 + $0x20] sm:$0xff] %vm1699, %v871
        %1705 = vst.msk [vmem:[%s442 + $0x28] sm:$0xff] %vm1699, %v874
        %1706 = vst.msk [vmem:[%s442 + $0x30] sm:$0xff] %vm1699, %v879
        %1707 = vst.msk [vmem:[%s442 + $0x38] sm:$0xff] %vm1699, %v882
        %1708 = vst.msk [vmem:[%s442 + $0x40] sm:$0xff] %vm1699, %v887
        %1709 = vst.msk [vmem:[%s442 + $0x48] sm:$0xff] %vm1699, %v890
        %1710 = vst.msk [vmem:[%s442 + $0x50] sm:$0xff] %vm1699, %v895
        %1711 = vst.msk [vmem:[%s442 + $0x58] sm:$0xff] %vm1699, %v898
        %1712 = vst.msk [vmem:[%s442 + $0x60] sm:$0xff] %vm1699, %v903
        %1713 = vst.msk [vmem:[%s442 + $0x68] sm:$0xff] %vm1699, %v906
        %1714 = vst.msk [vmem:[%s442 + $0x70] sm:$0xff] %vm1699, %v911
        %1715 = vst.msk [vmem:[%s442 + $0x78] sm:$0xff] %vm1699, %v914
        %s1716 = sand.u32 %s257, 1
        %s1717 = scalar_lea.sflag [#allocation4], %s1716
        %s1718 = sand.u32 %s257, 1
        %s1719 = smul.addr %s1718, 256
        %s1720 = scalar_lea.vmem [#allocation5], %s1719
        %s1721 = smul.u32 16, %s29
        %p1722 = scmp.lt.s32.totalorder %s1721, 31
        %s1723 = scalar_select %p1722, %s1721, 31
        %s1724 = smul.addr %s1723, 8
        %s1725 = scalar_lea.vmem %s11, %s1724
        // Predicated region
        $region65: #{tpu_custom_call.1} parent=59 // pred_check
          %p1726 = pneg %p267
        $region66: #{tpu_custom_call.1} parent=59 // pred_check_branch
          %1728 = sbr.rel (%p1726) target = $region68
        $region67: #{tpu_custom_call.1} parent=59 // pred_region
          %s1729 = smul.u32 16, %s29
          %s1731 = ssub.s32 4096, 4096
          %1732 = vsyncadd %s1717, %s1731
          %s1733 = smul.addr %s1729, 2
          %s1734 = smul.addr %s1733, 128
          %s1735 = scalar_lea.hbm %s10, %s1734
          %s1736 = sshll.u32 %s1720, 4
          %s1737 = int_to_ptr.vmem [resolvable:$true] %s1736
          %1742 = dma.vmem_to_hbm [thread:$0]  %s1737, 4096, %s1735, %s1717, 256, 256, 16
        $region68: #{tpu_custom_call.1} parent=59 // pred_fallthru
          _
        // Predicated region
        $region69: #{tpu_custom_call.1} parent=59 // pred_check
          %p1743 = pneg %p293
        $region70: #{tpu_custom_call.1} parent=59 // pred_check_branch
          %1745 = sbr.rel (%p1743) target = $region72
        $region71: #{tpu_custom_call.1} parent=59 // pred_region
          %s1746 = smul.u32 16, %s29
        $region72: #{tpu_custom_call.1} parent=59 // pred_fallthru
          _
      $region60: #{tpu_custom_call.1} parent=5 // pred_fallthru
        _
      %p1747 = scmp.le.s32.totalorder 2, %s24
      // Predicated region
      $region73: #{tpu_custom_call.1} parent=5 // pred_check
        %p1748 = pneg %p1747
      $region74: #{tpu_custom_call.1} parent=5 // pred_check_branch
        %1750 = sbr.rel (%p1748) target = $region76
      $region75: #{tpu_custom_call.1} parent=5 // pred_region
        %s1751 = ssub.s32 %s24, 2
        // Predicated region
        $region77: #{tpu_custom_call.1} parent=75 // pred_check
          %p1752 = pneg %p273
        $region78: #{tpu_custom_call.1} parent=75 // pred_check_branch
          %1754 = sbr.rel (%p1752) target = $region80
        $region79: #{tpu_custom_call.1} parent=75 // pred_region
          %s1755 = sand.u32 %s258, 1
          %s1756 = scalar_lea.sflag [#allocation4], %s1755
          %s1757 = sand.u32 %s258, 1
          %s1758 = smul.addr %s1757, 256
          %s1759 = scalar_lea.vmem [#allocation5], %s1758
          %1760 = dma.done %s1756, 4096
        $region80: #{tpu_custom_call.1} parent=75 // pred_fallthru
          _
        // Predicated region
        $region81: #{tpu_custom_call.1} parent=75 // pred_check
          %p1761 = pneg %p299
        $region82: #{tpu_custom_call.1} parent=75 // pred_check_branch
          %1763 = sbr.rel (%p1761) target = $region84
        $region83: #{tpu_custom_call.1} parent=75 // pred_region
          %s1764 = smul.u32 16, %s30
          %p1765 = scmp.lt.s32.totalorder %s1764, 31
          %s1766 = scalar_select %p1765, %s1764, 31
          %s1767 = smul.addr %s1766, 8
          %s1768 = scalar_lea.vmem %s11, %s1767
        $region84: #{tpu_custom_call.1} parent=75 // pred_fallthru
          _
      $region76: #{tpu_custom_call.1} parent=5 // pred_fallthru
        _
    $region6: #{tpu_custom_call.1} parent=1 // loop_footer
      %s28 = sadd.s32 1, %s24
    $region7: #{tpu_custom_call.1} parent=1 // loop_footer_branch
      %23 = sbr.rel target = $region3
    $region8: #{tpu_custom_call.1} parent=1 // loop_exit
      _
    %1769 = vsyncpa [#allocation3], 1
    %s1770 = scalar_lea.sflag [#allocation3], 1
    %1771 = vsyncpa %s1770, 1
    %1772 = vsyncpa [#allocation4], 1
    %s1773 = scalar_lea.sflag [#allocation4], 1
    %1774 = vsyncpa %s1773, 1

</llo_original>
